<compile_context>
chip_gen: v7x
topology: tpu7x:2x2x1
jax: 0.10.0
libtpu: 0.0.40
codegen_flags: <defaults>
</compile_context>

<pallas_src>
import numpy as np
import jax
import jax.numpy as jnp
from jax.experimental import pallas as pl
from jax.experimental.pallas import tpu as pltpu

LANE = 128          # TPU lane width; feature dims are zero-padded to this.
MAX_E_TILE = 2048   # edges per grid step (reduction axis)
MAX_N_TILE = 256    # output nodes per grid step (parallel axis)


def _ceil_to(x, m):
    return ((int(x) + m - 1) // m) * m


# -----------------------------------------------------------------------------
# Pallas kernels
# -----------------------------------------------------------------------------

def _gnn_gru_kernel(hs_ref, rel_ref, ridx_ref, obj_ref, h0_ref,
                    relacat_ref, hqr_ref, ws_ref, waba_ref, wh_ref,
                    wi_ref, whg_ref, gb_ref,
                    out_ref, acc_ref):
    """Fused per-layer hot path.

    grid = (N_tiles [parallel], E_tiles [arbitrary/reduction]).
    Per (nj, ek): per-edge attention + alpha*message, scatter-sum into the
    resident (N_tile, H) f32 accumulator.  Epilogue (last E tile): W_h + relu,
    then the single-step GRU gate, written to out_ref.
    """
    nj = pl.program_id(0)
    ek = pl.program_id(1)
    n_ek = pl.num_programs(1)

    Et, Hp = hs_ref.shape
    Rp = relacat_ref.shape[0]
    Bp = hqr_ref.shape[0]
    Nt = acc_ref.shape[0]

    @pl.when(ek == 0)
    def _init():
        acc_ref[...] = jnp.zeros_like(acc_ref)

    hs = hs_ref[...]                                           # (Et, Hp) f32
    rel = rel_ref[...]                                         # (Et, 1) int32
    ridx = ridx_ref[...]                                       # (Et, 1) int32
    obj = obj_ref[...]                                         # (1, Et) int32

    # In-kernel gather of hr and hr@Wr (fused into one MXU pass) via a one-hot
    # over the tiny relation table: (Et, Rp) @ [rela | rela@Wr] (Rp, Hp+Ap).
    rel_oh = (jax.lax.broadcasted_iota(jnp.int32, (Et, Rp), 1) == rel
              ).astype(jnp.bfloat16)
    hr_cat = jnp.dot(rel_oh, relacat_ref[...].astype(jnp.bfloat16),
                     preferred_element_type=jnp.float32)       # (Et, Hp+Ap)
    hr = hr_cat[:, :Hp]
    hr_attn = hr_cat[:, Hp:]

    # hqr attention contribution (Wqr(rela_embed[q_rel]) + bqr), gathered by
    # the per-edge batch index, again as a tiny one-hot matmul.
    b_oh = (jax.lax.broadcasted_iota(jnp.int32, (Et, Bp), 1) == ridx
            ).astype(jnp.bfloat16)
    hqr_attn = jnp.dot(b_oh, hqr_ref[...].astype(jnp.bfloat16),
                       preferred_element_type=jnp.float32)     # (Et, Ap)

    hs_attn = jnp.dot(hs.astype(jnp.bfloat16), ws_ref[...].astype(jnp.bfloat16),
                      preferred_element_type=jnp.float32)      # (Et, Ap)

    attn = jnp.maximum(hs_attn + hr_attn + hqr_attn, 0.0)      # ReLU

    # w_alpha logit: VPU multiply + lane reduce (no width-1 MXU matmul).
    wab = waba_ref[...]                                        # (2, LANE)
    wa_row = wab[0:1, :]
    ba = wab[1:2, 0:1]
    logit = jnp.sum(attn * wa_row, axis=-1, keepdims=True) + ba
    alpha = jax.nn.sigmoid(logit)                              # (Et, 1)

    msg = (alpha * (hs + hr)).astype(jnp.bfloat16)             # (Et, Hp)

    # Scatter-sum into this N-tile.  One-hot is generated directly in the
    # (Nt, Et) orientation so the contraction runs over the last LHS dim
    # (no transpose / relayout on the largest intermediate).
    node_id = jax.lax.broadcasted_iota(jnp.int32, (Nt, Et), 0) + nj * Nt
    n_oh = (node_id == obj).astype(jnp.bfloat16)               # (Nt, Et)
    acc_ref[...] += jnp.dot(n_oh, msg, preferred_element_type=jnp.float32)

    @pl.when(ek == n_ek - 1)
    def _epilogue():
        agg = acc_ref[...]
        h_new = jnp.maximum(
            jnp.dot(agg.astype(jnp.bfloat16), wh_ref[...].astype(jnp.bfloat16),
                    preferred_element_type=jnp.float32), 0.0)  # act = relu

        # Fused single-step GRU (PyTorch gate order r, z, n): x = h_new, h = h0.
        h0 = h0_ref[...]
        gb = gb_ref[...]                                       # (2, 3Hp)
        gi = jnp.dot(h_new.astype(jnp.bfloat16), wi_ref[...].astype(jnp.bfloat16),
                     preferred_element_type=jnp.float32) + gb[0:1, :]
        gh = jnp.dot(h0.astype(jnp.bfloat16), whg_ref[...].astype(jnp.bfloat16),
                     preferred_element_type=jnp.float32) + gb[1:2, :]
        r = jax.nn.sigmoid(gi[:, :Hp] + gh[:, :Hp])
        z = jax.nn.sigmoid(gi[:, Hp:2 * Hp] + gh[:, Hp:2 * Hp])
        n = jnp.tanh(gi[:, 2 * Hp:] + r * gh[:, 2 * Hp:])
        out_ref[...] = (1.0 - z) * n + z * h0


def _score_kernel(h_ref, w_ref, o_ref):
    o_ref[...] = jnp.dot(h_ref[...], w_ref[...],
                         preferred_element_type=jnp.float32)


# -----------------------------------------------------------------------------
# Pallas wrappers
# -----------------------------------------------------------------------------

def gnn_gru_layer_pallas(hs, rel, ridx, obj, h0, lp, dp, hqr_tbl, n_out_nodes):
    """Fused GNN layer + GRU gate.  Returns (padded hidden (N_pad, Hp), n_tile)."""
    Hp = dp["Hp"]
    E = int(hs.shape[0])
    N = int(n_out_nodes)

    e_tile = min(MAX_E_TILE, _ceil_to(max(E, 1), LANE))
    e_pad = _ceil_to(max(E, 1), e_tile)
    n_tile = min(MAX_N_TILE, _ceil_to(N, 8))
    n_pad = _ceil_to(N, n_tile)

    hs_p = jnp.zeros((e_pad, Hp), jnp.float32).at[:E].set(hs)
    rel_p = jnp.zeros((e_pad, 1), jnp.int32).at[:E, 0].set(jnp.asarray(rel, jnp.int32))
    ridx_p = jnp.zeros((e_pad, 1), jnp.int32).at[:E, 0].set(jnp.asarray(ridx, jnp.int32))
    obj_p = jnp.full((1, e_pad), -1, jnp.int32).at[0, :E].set(jnp.asarray(obj, jnp.int32))
    h0_p = jnp.zeros((n_pad, Hp), jnp.float32).at[:N].set(h0)

    grid = (n_pad // n_tile, e_pad // e_tile)

    def _const(arr):
        return pl.BlockSpec(arr.shape, lambda nj, ek: (0, 0))

    out = pl.pallas_call(
        _gnn_gru_kernel,
        out_shape=jax.ShapeDtypeStruct((n_pad, Hp), jnp.float32),
        grid_spec=pltpu.PrefetchScalarGridSpec(
            num_scalar_prefetch=0,
            grid=grid,
            in_specs=[
                pl.BlockSpec((e_tile, Hp), lambda nj, ek: (ek, 0)),   # hs
                pl.BlockSpec((e_tile, 1), lambda nj, ek: (ek, 0)),    # rel
                pl.BlockSpec((e_tile, 1), lambda nj, ek: (ek, 0)),    # r_idx
                pl.BlockSpec((1, e_tile), lambda nj, ek: (0, ek)),    # obj
                pl.BlockSpec((n_tile, Hp), lambda nj, ek: (nj, 0)),   # h0
                _const(lp["rela_cat"]),                               # [rela | rela@Wr]
                _const(hqr_tbl),                                      # Wqr(rela[q_rel]) + bqr
                _const(lp["Ws_p"]),
                _const(lp["wa_ba"]),                                  # [wa ; ba]
                _const(lp["Wh_p"]),
                _const(dp["gru_wi"]),                                 # [Wir|Wiz|Win]
                _const(dp["gru_wh"]),                                 # [Whr|Whz|Whn]
                _const(dp["gru_b"]),                                  # [bi ; bh]
            ],
            out_specs=pl.BlockSpec((n_tile, Hp), lambda nj, ek: (nj, 0)),
            scratch_shapes=[pltpu.VMEM((n_tile, Hp), jnp.float32)],
        ),
        compiler_params=pltpu.CompilerParams(
            dimension_semantics=("parallel", "arbitrary"),
            vmem_limit_bytes=32 * 1024 * 1024),
    )(hs_p, rel_p, ridx_p, obj_p, h0_p,
      lp["rela_cat"], hqr_tbl, lp["Ws_p"], lp["wa_ba"], lp["Wh_p"],
      dp["gru_wi"], dp["gru_wh"], dp["gru_b"])
    return out, n_tile


def final_score_pallas(hidden_pad, w_final_pad, n_tile):
    """W_final projection (cold: runs once per forward)."""
    n_pad, Hp = hidden_pad.shape
    return pl.pallas_call(
        _score_kernel,
        out_shape=jax.ShapeDtypeStruct((n_pad, 1), jnp.float32),
        grid_spec=pltpu.PrefetchScalarGridSpec(
            num_scalar_prefetch=0,
            grid=(n_pad // n_tile,),
            in_specs=[pl.BlockSpec((n_tile, Hp), lambda i: (i, 0)),
                      pl.BlockSpec((Hp, 1), lambda i: (0, 0))],
            out_specs=pl.BlockSpec((n_tile, 1), lambda i: (i, 0))),
        compiler_params=pltpu.CompilerParams(
            dimension_semantics=("parallel",),
            vmem_limit_bytes=32 * 1024 * 1024),
    )(hidden_pad, w_final_pad)


# -----------------------------------------------------------------------------
# Host-side (deterministic) synthetic KG + loader.get_neighbors equivalent
# -----------------------------------------------------------------------------

def build_adj(n_nodes_kg, n_rel, n_users, n_items):
    """Deterministic synthetic adjacency: 3 outgoing edges per entity."""
    adj = []
    for v in range(n_nodes_kg):
        outs = [((v) % (2 * n_rel), (3 * v + 1) % n_nodes_kg),
                ((v + 1) % (2 * n_rel), (7 * v + 2) % n_nodes_kg),
                ((v + 2) % (2 * n_rel), n_users + (v % n_items))]  # guaranteed item tail
        adj.append(outs)
    return adj


def get_neighbors(nodes, adj, n_rel):
    """nodes: (M,2) int [batch_idx, entity].  Mirrors loader.get_neighbors."""
    edges = []
    for hi, (b, v) in enumerate(nodes):
        edges.append((b, v, 2 * n_rel + 2, v, hi))       # idd self-loop
        for (r, t) in adj[v]:
            edges.append((b, v, r, t, hi))
    edges = np.array(edges, dtype=np.int64)
    new_nodes, tail_index = np.unique(edges[:, [0, 3]], axis=0, return_inverse=True)
    edges = np.concatenate([edges, tail_index[:, None]], axis=1)  # col5 = tail idx
    idd_mask = edges[:, 2] == 2 * n_rel + 2
    order = np.argsort(edges[idd_mask, 4])
    old_nodes_new_idx = edges[idd_mask, 5][order]
    return new_nodes, edges, old_nodes_new_idx


# -----------------------------------------------------------------------------
# Parameter init (logical dims) and device-side padded/fused parameter prep
# -----------------------------------------------------------------------------

def init_params(key, n_layer, hidden_dim, attn_dim, n_rel):
    def nrm(k, shape):
        return 0.1 * jax.random.normal(k, shape, jnp.float32)

    layer_params = []
    for _ in range(n_layer):
        keys = jax.random.split(key, 9)
        key = keys[0]
        layer_params.append(dict(
            rela_embed=nrm(keys[1], (2 * n_rel + 3, hidden_dim)),
            Ws=nrm(keys[2], (hidden_dim, attn_dim)),     # pre-transposed (in, out)
            Wr=nrm(keys[3], (hidden_dim, attn_dim)),
            Wqr=nrm(keys[4], (hidden_dim, attn_dim)),
            bqr=nrm(keys[5], (1, attn_dim)),
            wa=nrm(keys[6], (attn_dim, 1)),
            ba=nrm(keys[7], (1, 1)),
            Wh=nrm(keys[8], (hidden_dim, hidden_dim)),
        ))

    keys = jax.random.split(key, 14)
    gru_params = dict(
        wir=nrm(keys[0], (hidden_dim, hidden_dim)),
        wiz=nrm(keys[1], (hidden_dim, hidden_dim)),
        win=nrm(keys[2], (hidden_dim, hidden_dim)),
        whr=nrm(keys[3], (hidden_dim, hidden_dim)),
        whz=nrm(keys[4], (hidden_dim, hidden_dim)),
        whn=nrm(keys[5], (hidden_dim, hidden_dim)),
        bir=nrm(keys[6], (1, hidden_dim)),
        biz=nrm(keys[7], (1, hidden_dim)),
        bin=nrm(keys[8], (1, hidden_dim)),
        bhr=nrm(keys[9], (1, hidden_dim)),
        bhz=nrm(keys[10], (1, hidden_dim)),
        bhn=nrm(keys[11], (1, hidden_dim)),
    )
    w_final = nrm(keys[12], (hidden_dim, 1))
    return layer_params, gru_params, w_final


def prepare_device_params(layer_params, gru_params, w_final, cfg):
    """Zero-pad feature dims to 128 lanes and pre-fuse weight matrices.

    Padding is exact: all padded columns carry zeros through the whole forward.
    """
    H, A = cfg["hidden_dim"], cfg["attn_dim"]
    Hp = _ceil_to(H, LANE)
    Ap = _ceil_to(A, LANE)
    R = 2 * cfg["n_rel"] + 3
    Rp = _ceil_to(R, 8)

    def pad2(a, r, c):
        return jnp.zeros((r, c), jnp.float32).at[:a.shape[0], :a.shape[1]].set(a)

    layers = []
    for lp in layer_params:
        rela_p = pad2(lp["rela_embed"], Rp, Hp)
        Wr_p = pad2(lp["Wr"], Hp, Ap)
        Ws_p = pad2(lp["Ws"], Hp, Ap)
        Wqr_p = pad2(lp["Wqr"], Hp, Ap)
        bqr_p = pad2(lp["bqr"], 1, Ap)
        Wh_p = pad2(lp["Wh"], Hp, Hp)
        wa_row = pad2(lp["wa"].T, 1, Ap)
        ba_row = jnp.full((1, LANE), lp["ba"][0, 0], jnp.float32)
        wa_ba = jnp.concatenate([wa_row, ba_row], axis=0)             # (2, LANE)
        rela_cat = jnp.concatenate([rela_p, rela_p @ Wr_p], axis=1)   # (Rp, Hp+Ap)
        layers.append(dict(rela_p=rela_p, Wqr_p=Wqr_p, bqr_p=bqr_p,
                           Ws_p=Ws_p, wa_ba=wa_ba, Wh_p=Wh_p,
                           rela_cat=rela_cat))

    g = gru_params
    gru_wi = jnp.concatenate([pad2(g["wir"], Hp, Hp), pad2(g["wiz"], Hp, Hp),
                              pad2(g["win"], Hp, Hp)], axis=1)        # (Hp, 3Hp)
    gru_wh = jnp.concatenate([pad2(g["whr"], Hp, Hp), pad2(g["whz"], Hp, Hp),
                              pad2(g["whn"], Hp, Hp)], axis=1)        # (Hp, 3Hp)
    bi_cat = jnp.concatenate([pad2(g["bir"], 1, Hp), pad2(g["biz"], 1, Hp),
                              pad2(g["bin"], 1, Hp)], axis=1)
    bh_cat = jnp.concatenate([pad2(g["bhr"], 1, Hp), pad2(g["bhz"], 1, Hp),
                              pad2(g["bhn"], 1, Hp)], axis=1)
    gru_b = jnp.concatenate([bi_cat, bh_cat], axis=0)                 # (2, 3Hp)
    w_final_p = pad2(w_final, Hp, 1)

    return dict(Hp=Hp, Ap=Ap, Rp=Rp, layers=layers,
                gru_wi=gru_wi, gru_wh=gru_wh, gru_b=gru_b, w_final=w_final_p)


# -----------------------------------------------------------------------------
# KUCNet_trans forward (glue in numpy / jnp, hot path in Pallas)
# -----------------------------------------------------------------------------

def kucnet_trans_forward(subs, rels, dev_params, adj, cfg):
    n = len(subs)
    Hp, Ap = dev_params["Hp"], dev_params["Ap"]
    n_layer, n_rel = cfg["n_layer"], cfg["n_rel"]
    n_users, n_items = cfg["n_users"], cfg["n_items"]

    q_sub = np.asarray(subs, dtype=np.int64)
    q_rel = jnp.asarray(rels, dtype=jnp.int32)
    Bp = max(8, _ceil_to(n, 8))

    h0 = jnp.zeros((n, Hp), jnp.float32)
    nodes = np.stack([np.arange(n, dtype=np.int64), q_sub], axis=1)
    hidden = jnp.zeros((n, Hp), jnp.float32)
    final_nodes = None
    hidden_pad = None
    n_tile = None
    n_out = n

    for i in range(n_layer):
        loader_nodes, edges, onni = get_neighbors(nodes, adj, n_rel)
        lp = dev_params["layers"][i]

        # TODO(synk): the middle-layer PPR variadic_topk edge pruning
        # (0 < id_layer < n_layer-1) is host-side data-dependent selection with
        # no Pallas equivalent; with n_layer=2 that branch never executes.
        if i == n_layer - 1:
            sampled_mask = ((loader_nodes[:, 1] > n_users - 1)
                            & (loader_nodes[:, 1] < n_users + n_items))
            item_mask = (edges[:, 3] > n_users - 1) & (edges[:, 3] < n_users + n_items)
            edges_f = edges[item_mask]
            new_nodes, tail_index = np.unique(edges_f[:, [0, 3]], axis=0,
                                              return_inverse=True)
            edges_f = np.concatenate([edges_f[:, 0:5], tail_index[:, None]], axis=1)
            final_nodes = new_nodes
            scatter_nodes = new_nodes
        else:
            sampled_mask = None
            edges_f = edges
            scatter_nodes = loader_nodes

        sub = edges_f[:, 4]
        rel = edges_f[:, 2]
        obj = edges_f[:, 5]
        r_idx = edges_f[:, 0]

        hs = hidden[sub]                                  # node-state gather (glue)

        # Tiny per-layer, per-query table: Wqr(rela_embed[q_rel]) + bqr, padded.
        hqr_tbl = lp["rela_p"][q_rel] @ lp["Wqr_p"] + lp["bqr_p"]
        hqr_tbl = jnp.zeros((Bp, Ap), jnp.float32).at[:n].set(hqr_tbl)

        # h0 index_copy_ into the new (loader) node list (+ item filter at last layer)
        h0_new = jnp.zeros((loader_nodes.shape[0], Hp), jnp.float32).at[onni].set(h0)
        if i == n_layer - 1:
            h0_new = h0_new[np.asarray(sampled_mask)]
        n_out = int(scatter_nodes.shape[0])

        # dropout: eval-mode identity
        hidden_pad, n_tile = gnn_gru_layer_pallas(
            hs, rel, r_idx, obj, h0_new, lp, dev_params, hqr_tbl, n_out)
        hidden = hidden_pad[:n_out]
        h0 = hidden
        nodes = loader_nodes                              # t_nodes for next layer

    scores = final_score_pallas(hidden_pad, dev_params["w_final"], n_tile)[:n_out, 0]
    scores_all = jnp.zeros((n, n_items), jnp.float32).at[
        np.asarray(final_nodes[:, 0]),
        np.asarray(final_nodes[:, 1] - n_users)].set(scores)
    return scores_all


# -----------------------------------------------------------------------------
# Main
# -----------------------------------------------------------------------------

if __name__ == "__main__":
    cfg = dict(n_layer=2, hidden_dim=32, attn_dim=32,
               n_rel=3, n_users=4, n_items=5, n_nodes_kg=15)

    key = jax.random.PRNGKey(0)
    layer_params, gru_params, w_final = init_params(
        key, cfg["n_layer"], cfg["hidden_dim"], cfg["attn_dim"], cfg["n_rel"])
    dev_params = prepare_device_params(layer_params, gru_params, w_final, cfg)

    adj = build_adj(cfg["n_nodes_kg"], cfg["n_rel"], cfg["n_users"], cfg["n_items"])

    subs = [0, 2]          # user ids (batch of 2 queries)
    rels = [1, 0]          # query relation ids

    scores_all = kucnet_trans_forward(subs, rels, dev_params, adj, cfg)
    scores_all = jax.block_until_ready(scores_all)
    assert scores_all.shape == (len(subs), cfg["n_items"])
    print("KERNEL_OK")
</pallas_src>

<mosaic_0001>
module attributes {stable_mosaic.version = 11 : i64} {
  func.func @_gnn_gru_kernel(%arg0: i32, %arg1: i32, %arg2: memref<128x128xf32, #tpu.memory_space<vmem>>, %arg3: memref<128x1xi32, #tpu.memory_space<vmem>>, %arg4: memref<128x1xi32, #tpu.memory_space<vmem>>, %arg5: memref<1x128xi32, #tpu.memory_space<vmem>>, %arg6: memref<8x128xf32, #tpu.memory_space<vmem>>, %arg7: memref<16x256xf32, #tpu.memory_space<vmem>>, %arg8: memref<8x128xf32, #tpu.memory_space<vmem>>, %arg9: memref<128x128xf32, #tpu.memory_space<vmem>>, %arg10: memref<2x128xf32, #tpu.memory_space<vmem>>, %arg11: memref<128x128xf32, #tpu.memory_space<vmem>>, %arg12: memref<128x384xf32, #tpu.memory_space<vmem>>, %arg13: memref<128x384xf32, #tpu.memory_space<vmem>>, %arg14: memref<2x384xf32, #tpu.memory_space<vmem>>, %arg15: memref<8x128xf32, #tpu.memory_space<vmem>>, %arg16: memref<8x128xf32, #tpu.memory_space<vmem>>) attributes {dimension_semantics = [#tpu.dimension_semantics<parallel>, #tpu.dimension_semantics<arbitrary>], iteration_bounds = array<i64: 1, 1>, scalar_prefetch = 0 : i64, scratch_operands = 1 : i64, tpu.core_type = #tpu.core_type<tc>, window_params = [{transform_indices = @transform_0, window_bounds = array<i64: 128, 128>}, {transform_indices = @transform_1, window_bounds = array<i64: 128, 1>}, {transform_indices = @transform_2, window_bounds = array<i64: 128, 1>}, {transform_indices = @transform_3, window_bounds = array<i64: 1, 128>}, {transform_indices = @transform_4, window_bounds = array<i64: 8, 128>}, {pipeline_mode = #tpu.pipeline_mode<synchronous>, transform_indices = @transform_5, window_bounds = array<i64: 16, 256>}, {pipeline_mode = #tpu.pipeline_mode<synchronous>, transform_indices = @transform_6, window_bounds = array<i64: 8, 128>}, {pipeline_mode = #tpu.pipeline_mode<synchronous>, transform_indices = @transform_7, window_bounds = array<i64: 128, 128>}, {pipeline_mode = #tpu.pipeline_mode<synchronous>, transform_indices = @transform_8, window_bounds = array<i64: 2, 128>}, {pipeline_mode = #tpu.pipeline_mode<synchronous>, transform_indices = @transform_9, window_bounds = array<i64: 128, 128>}, {pipeline_mode = #tpu.pipeline_mode<synchronous>, transform_indices = @transform_10, window_bounds = array<i64: 128, 384>}, {pipeline_mode = #tpu.pipeline_mode<synchronous>, transform_indices = @transform_11, window_bounds = array<i64: 128, 384>}, {pipeline_mode = #tpu.pipeline_mode<synchronous>, transform_indices = @transform_12, window_bounds = array<i64: 2, 384>}, {transform_indices = @transform_13, window_bounds = array<i64: 8, 128>}]} {
    %c0_i32 = arith.constant 0 : i32
    %0 = arith.cmpi eq, %arg1, %c0_i32 : i32
    %1 = arith.extui %0 : i1 to i32
    %c0_i32_0 = arith.constant 0 : i32
    %2 = arith.cmpi ne, %1, %c0_i32_0 : i32
    scf.if %2 {
      %cst_28 = arith.constant 0.000000e+00 : f32
      %69 = vector.broadcast %cst_28 : f32 to vector<8x128xf32>
      %c0_29 = arith.constant 0 : index
      %c0_30 = arith.constant 0 : index
      %70 = vector.load %arg16[%c0_29, %c0_30] : memref<8x128xf32, #tpu.memory_space<vmem>>, vector<8x128xf32>
      tpu.vector_store %arg16[%c0_29, %c0_30], %69 {strides = array<i32>} : memref<8x128xf32, #tpu.memory_space<vmem>>, vector<8x128xf32>,
    } else {
    }
    %c0 = arith.constant 0 : index
    %c0_1 = arith.constant 0 : index
    %3 = vector.load %arg2[%c0, %c0_1] : memref<128x128xf32, #tpu.memory_space<vmem>>, vector<128x128xf32>
    %c0_2 = arith.constant 0 : index
    %c0_3 = arith.constant 0 : index
    %4 = vector.load %arg3[%c0_2, %c0_3] : memref<128x1xi32, #tpu.memory_space<vmem>>, vector<128x1xi32>
    %c0_4 = arith.constant 0 : index
    %c0_5 = arith.constant 0 : index
    %5 = vector.load %arg4[%c0_4, %c0_5] : memref<128x1xi32, #tpu.memory_space<vmem>>, vector<128x1xi32>
    %c0_6 = arith.constant 0 : index
    %c0_7 = arith.constant 0 : index
    %6 = vector.load %arg5[%c0_6, %c0_7] : memref<1x128xi32, #tpu.memory_space<vmem>>, vector<1x128xi32>
    %7 = tpu.iota {dimensions = array<i32: 1>} : vector<128x16xi32>
    %8 = vector.broadcast %4 : vector<128x1xi32> to vector<128x16xi32>
    %9 = arith.cmpi eq, %7, %8 : vector<128x16xi32>
    %10 = arith.extui %9 : vector<128x16xi1> to vector<128x16xi32>
    %11 = arith.sitofp %10 : vector<128x16xi32> to vector<128x16xf32>
    %12 = arith.truncf %11 : vector<128x16xf32> to vector<128x16xbf16>
    %c0_8 = arith.constant 0 : index
    %c0_9 = arith.constant 0 : index
    %13 = vector.load %arg7[%c0_8, %c0_9] : memref<16x256xf32, #tpu.memory_space<vmem>>, vector<16x256xf32>
    %14 = arith.truncf %13 : vector<16x256xf32> to vector<16x256xbf16>
    %cst = arith.constant dense<0.000000e+00> : vector<128x256xf32>
    %15 = tpu.matmul %12, %14, %cst {dimension_numbers = #tpu.dot_dimension_numbers<[1], [0], [0], [1], [0, 0, 1, 1], [], []>} : vector<128x16xbf16>, vector<16x256xbf16>, vector<128x256xf32> -> vector<128x256xf32>
    %16 = vector.extract_strided_slice %15 {offsets = [0, 0], sizes = [128, 128], strides = [1, 1]} : vector<128x256xf32> to vector<128x128xf32>
    %17 = vector.extract_strided_slice %15 {offsets = [0, 128], sizes = [128, 128], strides = [1, 1]} : vector<128x256xf32> to vector<128x128xf32>
    %18 = tpu.iota {dimensions = array<i32: 1>} : vector<128x8xi32>
    %19 = vector.broadcast %5 : vector<128x1xi32> to vector<128x8xi32>
    %20 = arith.cmpi eq, %18, %19 : vector<128x8xi32>
    %21 = arith.extui %20 : vector<128x8xi1> to vector<128x8xi32>
    %22 = arith.sitofp %21 : vector<128x8xi32> to vector<128x8xf32>
    %23 = arith.truncf %22 : vector<128x8xf32> to vector<128x8xbf16>
    %c0_10 = arith.constant 0 : index
    %c0_11 = arith.constant 0 : index
    %24 = vector.load %arg8[%c0_10, %c0_11] : memref<8x128xf32, #tpu.memory_space<vmem>>, vector<8x128xf32>
    %25 = arith.truncf %24 : vector<8x128xf32> to vector<8x128xbf16>
    %cst_12 = arith.constant dense<0.000000e+00> : vector<128x128xf32>
    %26 = tpu.matmul %23, %25, %cst_12 {dimension_numbers = #tpu.dot_dimension_numbers<[1], [0], [0], [1], [0, 0, 1, 1], [], []>} : vector<128x8xbf16>, vector<8x128xbf16>, vector<128x128xf32> -> vector<128x128xf32>
    %27 = arith.truncf %3 : vector<128x128xf32> to vector<128x128xbf16>
    %c0_13 = arith.constant 0 : index
    %c0_14 = arith.constant 0 : index
    %28 = vector.load %arg9[%c0_13, %c0_14] : memref<128x128xf32, #tpu.memory_space<vmem>>, vector<128x128xf32>
    %29 = arith.truncf %28 : vector<128x128xf32> to vector<128x128xbf16>
    %cst_15 = arith.constant dense<0.000000e+00> : vector<128x128xf32>
    %30 = tpu.matmul %27, %29, %cst_15 {dimension_numbers = #tpu.dot_dimension_numbers<[1], [0], [0], [1], [0, 0, 1, 1], [], []>} : vector<128x128xbf16>, vector<128x128xbf16>, vector<128x128xf32> -> vector<128x128xf32>
    %31 = arith.addf %30, %17 : vector<128x128xf32>
    %32 = arith.addf %31, %26 : vector<128x128xf32>
    %cst_16 = arith.constant 0.000000e+00 : f32
    %33 = vector.broadcast %cst_16 : f32 to vector<128x128xf32>
    %34 = arith.maximumf %32, %33 : vector<128x128xf32>
    %c0_17 = arith.constant 0 : index
    %c0_18 = arith.constant 0 : index
    %35 = vector.load %arg10[%c0_17, %c0_18] : memref<2x128xf32, #tpu.memory_space<vmem>>, vector<2x128xf32>
    %36 = vector.extract_strided_slice %35 {offsets = [0, 0], sizes = [1, 128], strides = [1, 1]} : vector<2x128xf32> to vector<1x128xf32>
    %37 = vector.extract_strided_slice %35 {offsets = [1, 0], sizes = [1, 1], strides = [1, 1]} : vector<2x128xf32> to vector<1x1xf32>
    %38 = vector.broadcast %36 : vector<1x128xf32> to vector<128x128xf32>
    %39 = arith.mulf %34, %38 : vector<128x128xf32>
    %cst_19 = arith.constant dense<0.000000e+00> : vector<128xf32>
    %40 = vector.multi_reduction <add>, %39, %cst_19 [1] : vector<128x128xf32> to vector<128xf32>
    %41 = vector.shape_cast %40 : vector<128xf32> to vector<128x1xf32>
    %42 = vector.broadcast %37 : vector<1x1xf32> to vector<128x1xf32>
    %43 = arith.addf %41, %42 : vector<128x1xf32>
    %44 = arith.negf %43 : vector<128x1xf32>
    %45 = math.exp %44 : vector<128x1xf32>
    %cst_20 = arith.constant 1.000000e+00 : f32
    %46 = vector.broadcast %cst_20 : f32 to vector<128x1xf32>
    %47 = arith.addf %46, %45 : vector<128x1xf32>
    %48 = arith.divf %46, %47 : vector<128x1xf32>
    %49 = arith.addf %3, %16 : vector<128x128xf32>
    %50 = vector.broadcast %48 : vector<128x1xf32> to vector<128x128xf32>
    %51 = arith.mulf %50, %49 : vector<128x128xf32>
    %52 = arith.truncf %51 : vector<128x128xf32> to vector<128x128xbf16>
    %53 = tpu.iota {dimensions = array<i32: 0>} : vector<8x128xi32>
    %c8_i32 = arith.constant 8 : i32
    %54 = arith.muli %arg0, %c8_i32 : i32
    %55 = vector.broadcast %54 : i32 to vector<8x128xi32>
    %56 = arith.addi %53, %55 : vector<8x128xi32>
    %57 = vector.broadcast %6 : vector<1x128xi32> to vector<8x128xi32>
    %58 = arith.cmpi eq, %56, %57 : vector<8x128xi32>
    %59 = arith.extui %58 : vector<8x128xi1> to vector<8x128xi32>
    %60 = arith.sitofp %59 : vector<8x128xi32> to vector<8x128xf32>
    %61 = arith.truncf %60 : vector<8x128xf32> to vector<8x128xbf16>
    %c0_21 = arith.constant 0 : index
    %c0_22 = arith.constant 0 : index
    %62 = vector.load %arg16[%c0_21, %c0_22] : memref<8x128xf32, #tpu.memory_space<vmem>>, vector<8x128xf32>
    %cst_23 = arith.constant dense<0.000000e+00> : vector<8x128xf32>
    %63 = tpu.matmul %61, %52, %cst_23 {dimension_numbers = #tpu.dot_dimension_numbers<[1], [0], [0], [1], [0, 0, 1, 1], [], []>} : vector<8x128xbf16>, vector<128x128xbf16>, vector<8x128xf32> -> vector<8x128xf32>
    %64 = arith.addf %62, %63 : vector<8x128xf32>
    %c0_24 = arith.constant 0 : index
    %c0_25 = arith.constant 0 : index
    %65 = vector.load %arg16[%c0_24, %c0_25] : memref<8x128xf32, #tpu.memory_space<vmem>>, vector<8x128xf32>
    tpu.vector_store %arg16[%c0_24, %c0_25], %64 {strides = array<i32>} : memref<8x128xf32, #tpu.memory_space<vmem>>, vector<8x128xf32>,
    %c0_i32_26 = arith.constant 0 : i32
    %66 = arith.cmpi eq, %arg1, %c0_i32_26 : i32
    %67 = arith.extui %66 : i1 to i32
    %c0_i32_27 = arith.constant 0 : i32
    %68 = arith.cmpi ne, %67, %c0_i32_27 : i32
    scf.if %68 {
      %c0_28 = arith.constant 0 : index
      %c0_29 = arith.constant 0 : index
      %69 = vector.load %arg16[%c0_28, %c0_29] : memref<8x128xf32, #tpu.memory_space<vmem>>, vector<8x128xf32>
      %70 = arith.truncf %69 : vector<8x128xf32> to vector<8x128xbf16>
      %c0_30 = arith.constant 0 : index
      %c0_31 = arith.constant 0 : index
      %71 = vector.load %arg11[%c0_30, %c0_31] : memref<128x128xf32, #tpu.memory_space<vmem>>, vector<128x128xf32>
      %72 = arith.truncf %71 : vector<128x128xf32> to vector<128x128xbf16>
      %cst_32 = arith.constant dense<0.000000e+00> : vector<8x128xf32>
      %73 = tpu.matmul %70, %72, %cst_32 {dimension_numbers = #tpu.dot_dimension_numbers<[1], [0], [0], [1], [0, 0, 1, 1], [], []>} : vector<8x128xbf16>, vector<128x128xbf16>, vector<8x128xf32> -> vector<8x128xf32>
      %cst_33 = arith.constant 0.000000e+00 : f32
      %74 = vector.broadcast %cst_33 : f32 to vector<8x128xf32>
      %75 = arith.maximumf %73, %74 : vector<8x128xf32>
      %c0_34 = arith.constant 0 : index
      %c0_35 = arith.constant 0 : index
      %76 = vector.load %arg6[%c0_34, %c0_35] : memref<8x128xf32, #tpu.memory_space<vmem>>, vector<8x128xf32>
      %c0_36 = arith.constant 0 : index
      %c0_37 = arith.constant 0 : index
      %77 = vector.load %arg14[%c0_36, %c0_37] : memref<2x384xf32, #tpu.memory_space<vmem>>, vector<2x384xf32>
      %78 = arith.truncf %75 : vector<8x128xf32> to vector<8x128xbf16>
      %c0_38 = arith.constant 0 : index
      %c0_39 = arith.constant 0 : index
      %79 = vector.load %arg12[%c0_38, %c0_39] : memref<128x384xf32, #tpu.memory_space<vmem>>, vector<128x384xf32>
      %80 = arith.truncf %79 : vector<128x384xf32> to vector<128x384xbf16>
      %cst_40 = arith.constant dense<0.000000e+00> : vector<8x384xf32>
      %81 = tpu.matmul %78, %80, %cst_40 {dimension_numbers = #tpu.dot_dimension_numbers<[1], [0], [0], [1], [0, 0, 1, 1], [], []>} : vector<8x128xbf16>, vector<128x384xbf16>, vector<8x384xf32> -> vector<8x384xf32>
      %82 = vector.extract_strided_slice %77 {offsets = [0, 0], sizes = [1, 384], strides = [1, 1]} : vector<2x384xf32> to vector<1x384xf32>
      %83 = vector.broadcast %82 : vector<1x384xf32> to vector<8x384xf32>
      %84 = arith.addf %81, %83 : vector<8x384xf32>
      %85 = arith.truncf %76 : vector<8x128xf32> to vector<8x128xbf16>
      %c0_41 = arith.constant 0 : index
      %c0_42 = arith.constant 0 : index
      %86 = vector.load %arg13[%c0_41, %c0_42] : memref<128x384xf32, #tpu.memory_space<vmem>>, vector<128x384xf32>
      %87 = arith.truncf %86 : vector<128x384xf32> to vector<128x384xbf16>
      %cst_43 = arith.constant dense<0.000000e+00> : vector<8x384xf32>
      %88 = tpu.matmul %85, %87, %cst_43 {dimension_numbers = #tpu.dot_dimension_numbers<[1], [0], [0], [1], [0, 0, 1, 1], [], []>} : vector<8x128xbf16>, vector<128x384xbf16>, vector<8x384xf32> -> vector<8x384xf32>
      %89 = vector.extract_strided_slice %77 {offsets = [1, 0], sizes = [1, 384], strides = [1, 1]} : vector<2x384xf32> to vector<1x384xf32>
      %90 = vector.broadcast %89 : vector<1x384xf32> to vector<8x384xf32>
      %91 = arith.addf %88, %90 : vector<8x384xf32>
      %92 = vector.extract_strided_slice %84 {offsets = [0, 0], sizes = [8, 128], strides = [1, 1]} : vector<8x384xf32> to vector<8x128xf32>
      %93 = vector.extract_strided_slice %91 {offsets = [0, 0], sizes = [8, 128], strides = [1, 1]} : vector<8x384xf32> to vector<8x128xf32>
      %94 = arith.addf %92, %93 : vector<8x128xf32>
      %95 = arith.negf %94 : vector<8x128xf32>
      %96 = math.exp %95 : vector<8x128xf32>
      %cst_44 = arith.constant 1.000000e+00 : f32
      %97 = vector.broadcast %cst_44 : f32 to vector<8x128xf32>
      %98 = arith.addf %97, %96 : vector<8x128xf32>
      %99 = arith.divf %97, %98 : vector<8x128xf32>
      %100 = vector.extract_strided_slice %84 {offsets = [0, 128], sizes = [8, 128], strides = [1, 1]} : vector<8x384xf32> to vector<8x128xf32>
      %101 = vector.extract_strided_slice %91 {offsets = [0, 128], sizes = [8, 128], strides = [1, 1]} : vector<8x384xf32> to vector<8x128xf32>
      %102 = arith.addf %100, %101 : vector<8x128xf32>
      %103 = arith.negf %102 : vector<8x128xf32>
      %104 = math.exp %103 : vector<8x128xf32>
      %cst_45 = arith.constant 1.000000e+00 : f32
      %105 = vector.broadcast %cst_45 : f32 to vector<8x128xf32>
      %106 = arith.addf %105, %104 : vector<8x128xf32>
      %107 = arith.divf %105, %106 : vector<8x128xf32>
      %108 = vector.extract_strided_slice %84 {offsets = [0, 256], sizes = [8, 128], strides = [1, 1]} : vector<8x384xf32> to vector<8x128xf32>
      %109 = vector.extract_strided_slice %91 {offsets = [0, 256], sizes = [8, 128], strides = [1, 1]} : vector<8x384xf32> to vector<8x128xf32>
      %110 = arith.mulf %99, %109 : vector<8x128xf32>
      %111 = arith.addf %108, %110 : vector<8x128xf32>
      %112 = math.tanh %111 : vector<8x128xf32>
      %cst_46 = arith.constant 1.000000e+00 : f32
      %113 = vector.broadcast %cst_46 : f32 to vector<8x128xf32>
      %114 = arith.subf %113, %107 : vector<8x128xf32>
      %115 = arith.mulf %114, %112 : vector<8x128xf32>
      %116 = arith.mulf %107, %76 : vector<8x128xf32>
      %117 = arith.addf %115, %116 : vector<8x128xf32>
      %c0_47 = arith.constant 0 : index
      %c0_48 = arith.constant 0 : index
      %118 = vector.load %arg15[%c0_47, %c0_48] : memref<8x128xf32, #tpu.memory_space<vmem>>, vector<8x128xf32>
      tpu.vector_store %arg15[%c0_47, %c0_48], %117 {strides = array<i32>} : memref<8x128xf32, #tpu.memory_space<vmem>>, vector<8x128xf32>,
    } else {
    }
    return
  }
  func.func @transform_0(%arg0: i32, %arg1: i32) -> (i32, i32) {
    %c0_i32 = arith.constant 0 : i32
    %c0_i32_0 = arith.constant 0 : i32
    return %arg1, %c0_i32 : i32, i32
  }
  func.func @transform_1(%arg0: i32, %arg1: i32) -> (i32, i32) {
    %c0_i32 = arith.constant 0 : i32
    %c0_i32_0 = arith.constant 0 : i32
    return %arg1, %c0_i32 : i32, i32
  }
  func.func @transform_2(%arg0: i32, %arg1: i32) -> (i32, i32) {
    %c0_i32 = arith.constant 0 : i32
    %c0_i32_0 = arith.constant 0 : i32
    return %arg1, %c0_i32 : i32, i32
  }
  func.func @transform_3(%arg0: i32, %arg1: i32) -> (i32, i32) {
    %c0_i32 = arith.constant 0 : i32
    %c0_i32_0 = arith.constant 0 : i32
    return %c0_i32, %arg1 : i32, i32
  }
  func.func @transform_4(%arg0: i32, %arg1: i32) -> (i32, i32) {
    %c0_i32 = arith.constant 0 : i32
    %c0_i32_0 = arith.constant 0 : i32
    return %arg0, %c0_i32 : i32, i32
  }
  func.func @transform_5(%arg0: i32, %arg1: i32) -> (i32, i32) {
    %c0_i32 = arith.constant 0 : i32
    %c0_i32_0 = arith.constant 0 : i32
    %c0_i32_1 = arith.constant 0 : i32
    return %c0_i32, %c0_i32_0 : i32, i32
  }
  func.func @transform_6(%arg0: i32, %arg1: i32) -> (i32, i32) {
    %c0_i32 = arith.constant 0 : i32
    %c0_i32_0 = arith.constant 0 : i32
    %c0_i32_1 = arith.constant 0 : i32
    return %c0_i32, %c0_i32_0 : i32, i32
  }
  func.func @transform_7(%arg0: i32, %arg1: i32) -> (i32, i32) {
    %c0_i32 = arith.constant 0 : i32
    %c0_i32_0 = arith.constant 0 : i32
    %c0_i32_1 = arith.constant 0 : i32
    return %c0_i32, %c0_i32_0 : i32, i32
  }
  func.func @transform_8(%arg0: i32, %arg1: i32) -> (i32, i32) {
    %c0_i32 = arith.constant 0 : i32
    %c0_i32_0 = arith.constant 0 : i32
    %c0_i32_1 = arith.constant 0 : i32
    return %c0_i32, %c0_i32_0 : i32, i32
  }
  func.func @transform_9(%arg0: i32, %arg1: i32) -> (i32, i32) {
    %c0_i32 = arith.constant 0 : i32
    %c0_i32_0 = arith.constant 0 : i32
    %c0_i32_1 = arith.constant 0 : i32
    return %c0_i32, %c0_i32_0 : i32, i32
  }
  func.func @transform_10(%arg0: i32, %arg1: i32) -> (i32, i32) {
    %c0_i32 = arith.constant 0 : i32
    %c0_i32_0 = arith.constant 0 : i32
    %c0_i32_1 = arith.constant 0 : i32
    return %c0_i32, %c0_i32_0 : i32, i32
  }
  func.func @transform_11(%arg0: i32, %arg1: i32) -> (i32, i32) {
    %c0_i32 = arith.constant 0 : i32
    %c0_i32_0 = arith.constant 0 : i32
    %c0_i32_1 = arith.constant 0 : i32
    return %c0_i32, %c0_i32_0 : i32, i32
  }
  func.func @transform_12(%arg0: i32, %arg1: i32) -> (i32, i32) {
    %c0_i32 = arith.constant 0 : i32
    %c0_i32_0 = arith.constant 0 : i32
    %c0_i32_1 = arith.constant 0 : i32
    return %c0_i32, %c0_i32_0 : i32, i32
  }
  func.func @transform_13(%arg0: i32, %arg1: i32) -> (i32, i32) {
    %c0_i32 = arith.constant 0 : i32
    %c0_i32_0 = arith.constant 0 : i32
    return %arg0, %c0_i32 : i32, i32
  }
}

</mosaic_0001>

<llo_original>
// kernel: tpu_custom_call.1
$region0: #{tpu_custom_call.1}
  #allocation0 [shape = 'u32[]', space=smem, size = 0x4, offset = 0x4, fixed_abs, tag = 'smem constant byte address 0x4 - core index']
  #allocation1 [shape = 'u32[144,128]{1,0:T(1,128)}', space=vmem, size = 0x12000, scoped, tag = 'internal scratch']
  #allocation2 [shape = 'f32[8,128]{1,0:T(8,128)}', space=vmem, size = 0x1000, scoped, tag = 'scratch operand']
  %s0 = inlined_call_operand.vmem [shape: f32[128,128], index: 0, kind: input, shape index: {}]
  %s1 = inlined_call_operand.vmem [shape: s32[128,1], index: 1, kind: input, shape index: {}]
  %s2 = inlined_call_operand.vmem [shape: s32[128,1], index: 2, kind: input, shape index: {}]
  %s3 = inlined_call_operand.hbm [shape: s32[1,128], index: 3, kind: input, shape index: {}]
  %s4 = inlined_call_operand.vmem [shape: f32[8,128], index: 4, kind: input, shape index: {}]
  %s5 = inlined_call_operand.hbm [shape: f32[16,256], index: 5, kind: input, shape index: {}]
  %s6 = inlined_call_operand.vmem [shape: f32[8,128], index: 6, kind: input, shape index: {}]
  %s7 = inlined_call_operand.vmem [shape: f32[128,128], index: 7, kind: input, shape index: {}]
  %s8 = inlined_call_operand.vmem [shape: f32[2,128], index: 8, kind: input, shape index: {}]
  %s9 = inlined_call_operand.hbm [shape: f32[128,128], index: 9, kind: input, shape index: {}]
  %s10 = inlined_call_operand.hbm [shape: f32[128,384], index: 10, kind: input, shape index: {}]
  %s11 = inlined_call_operand.hbm [shape: f32[128,384], index: 11, kind: input, shape index: {}]
  %s12 = inlined_call_operand.vmem [shape: f32[2,384], index: 12, kind: input, shape index: {}]
  %s13 = inlined_call_operand.hbm [shape: f32[8,128], index: 13, kind: output, shape index: {}]
  %s14 = sld [smem:[#allocation0]]
  $region90: #{tpu_custom_call.1} parent=0
    _
  %s16 = ssub.s32 1, %s14
  %s17 = scalar_select 0, %s16, %s14
  $region1: #{tpu_custom_call.1} parent=0
    #allocation3 [shape = 'u8[512]{0}', space=vmem, size = 0x400, scoped, tag = 'input window, operand 3, single buffered']
    #allocation4 [shape = 's32[1]{0}', space=sflag, size = 0x4, scoped, tag = 'scoped memory for tpu_custom_call.1']
    #allocation5 [shape = 's32[1]{0}', space=sflag, size = 0x4, scoped, tag = 'scoped memory for tpu_custom_call.1']
    #allocation6 [shape = 'u8[16384]{0}', space=vmem, size = 0x4000, scoped, tag = 'input window, operand 5, single buffered']
    #allocation7 [shape = 's32[1]{0}', space=sflag, size = 0x4, scoped, tag = 'scoped memory for tpu_custom_call.1']
    #allocation8 [shape = 'u8[65536]{0}', space=vmem, size = 0x10000, scoped, tag = 'input window, operand 9, single buffered']
    #allocation9 [shape = 'u8[196608]{0}', space=vmem, size = 0x30000, scoped, tag = 'input window, operand 10, single buffered']
    #allocation10 [shape = 's32[1]{0}', space=sflag, size = 0x4, scoped, tag = 'scoped memory for tpu_custom_call.1']
    #allocation11 [shape = 'u8[196608]{0}', space=vmem, size = 0x30000, scoped, tag = 'input window, operand 11, single buffered']
    #allocation12 [shape = 'u8[4096]{0}', space=vmem, size = 0x1000, scoped, tag = 'output window, operand 0, single buffered']
    %18 = vsyncpa [#allocation4], 0
    %19 = vsyncpa [#allocation7], 0
    %20 = vsyncpa [#allocation10], 0
    %21 = vsyncpa [#allocation5], 0
    // Predicated region
    $region2: #{tpu_custom_call.1} parent=1 // pred_check
      _
    $region3: #{tpu_custom_call.1} parent=1 // pred_check_branch
      %23 = sbr.rel (0) target = $region5
    $region4: #{tpu_custom_call.1} parent=1 // pred_region
      _
    $region5: #{tpu_custom_call.1} parent=1 // pred_fallthru
      _
    // Predicated region
    $region6: #{tpu_custom_call.1} parent=1 // pred_check
      _
    $region7: #{tpu_custom_call.1} parent=1 // pred_check_branch
      %25 = sbr.rel (0) target = $region9
    $region8: #{tpu_custom_call.1} parent=1 // pred_region
      _
    $region9: #{tpu_custom_call.1} parent=1 // pred_fallthru
      _
    // Predicated region
    $region10: #{tpu_custom_call.1} parent=1 // pred_check
      _
    $region11: #{tpu_custom_call.1} parent=1 // pred_check_branch
      %27 = sbr.rel (0) target = $region13
    $region12: #{tpu_custom_call.1} parent=1 // pred_region
      _
    $region13: #{tpu_custom_call.1} parent=1 // pred_fallthru
      _
    // Predicated region
    $region14: #{tpu_custom_call.1} parent=1 // pred_check
      _
    $region15: #{tpu_custom_call.1} parent=1 // pred_check_branch
      %29 = sbr.rel (0) target = $region17
    $region16: #{tpu_custom_call.1} parent=1 // pred_region
      %s31 = ssub.s32 16, 16
      %32 = vsyncadd [#allocation4], %s31
      %s34 = sshll.u32 [#allocation3], 4
      %s35 = int_to_ptr.vmem [resolvable:$true] %s34
      %37 = dma.hbm_to_vmem [thread:$0]  %s3, 16, %s35, [#allocation4]
    $region17: #{tpu_custom_call.1} parent=1 // pred_fallthru
      _
    // Predicated region
    $region18: #{tpu_custom_call.1} parent=1 // pred_check
      _
    $region19: #{tpu_custom_call.1} parent=1 // pred_check_branch
      %39 = sbr.rel (0) target = $region21
    $region20: #{tpu_custom_call.1} parent=1 // pred_region
      _
    $region21: #{tpu_custom_call.1} parent=1 // pred_fallthru
      _
    // Predicated region
    $region22: #{tpu_custom_call.1} parent=1 // pred_check
      _
    $region23: #{tpu_custom_call.1} parent=1 // pred_check_branch
      %41 = sbr.rel (0) target = $region25
    $region24: #{tpu_custom_call.1} parent=1 // pred_region
      %s43 = ssub.s32 512, 512
      %44 = vsyncadd [#allocation7], %s43
      %s45 = sshll.u32 [#allocation6], 4
      %s46 = int_to_ptr.vmem [resolvable:$true] %s45
      %51 = dma.hbm_to_vmem [thread:$0]  %s5, 512, %s46, [#allocation7], 256, 256, 16
    $region25: #{tpu_custom_call.1} parent=1 // pred_fallthru
      _
    // Predicated region
    $region26: #{tpu_custom_call.1} parent=1 // pred_check
      _
    $region27: #{tpu_custom_call.1} parent=1 // pred_check_branch
      %53 = sbr.rel (0) target = $region29
    $region28: #{tpu_custom_call.1} parent=1 // pred_region
      _
    $region29: #{tpu_custom_call.1} parent=1 // pred_fallthru
      _
    // Predicated region
    $region30: #{tpu_custom_call.1} parent=1 // pred_check
      _
    $region31: #{tpu_custom_call.1} parent=1 // pred_check_branch
      %55 = sbr.rel (0) target = $region33
    $region32: #{tpu_custom_call.1} parent=1 // pred_region
      _
    $region33: #{tpu_custom_call.1} parent=1 // pred_fallthru
      _
    // Predicated region
    $region34: #{tpu_custom_call.1} parent=1 // pred_check
      _
    $region35: #{tpu_custom_call.1} parent=1 // pred_check_branch
      %57 = sbr.rel (0) target = $region37
    $region36: #{tpu_custom_call.1} parent=1 // pred_region
      _
    $region37: #{tpu_custom_call.1} parent=1 // pred_fallthru
      _
    // Predicated region
    $region38: #{tpu_custom_call.1} parent=1 // pred_check
      _
    $region39: #{tpu_custom_call.1} parent=1 // pred_check_branch
      %59 = sbr.rel (0) target = $region41
    $region40: #{tpu_custom_call.1} parent=1 // pred_region
      %s61 = ssub.s32 2048, 2048
      %62 = vsyncadd [#allocation7], %s61
      %s63 = sshll.u32 [#allocation8], 4
      %s64 = int_to_ptr.vmem [resolvable:$true] %s63
      %69 = dma.hbm_to_vmem [thread:$0]  %s9, 2048, %s64, [#allocation7], 128, 128, 8
    $region41: #{tpu_custom_call.1} parent=1 // pred_fallthru
      _
    // Predicated region
    $region42: #{tpu_custom_call.1} parent=1 // pred_check
      _
    $region43: #{tpu_custom_call.1} parent=1 // pred_check_branch
      %71 = sbr.rel (0) target = $region45
    $region44: #{tpu_custom_call.1} parent=1 // pred_region
      %s73 = ssub.s32 6144, 6144
      %74 = vsyncadd [#allocation10], %s73
      %s75 = sshll.u32 [#allocation9], 4
      %s76 = int_to_ptr.vmem [resolvable:$true] %s75
      %81 = dma.hbm_to_vmem [thread:$0]  %s10, 6144, %s76, [#allocation10], 384, 384, 24
    $region45: #{tpu_custom_call.1} parent=1 // pred_fallthru
      _
    // Predicated region
    $region46: #{tpu_custom_call.1} parent=1 // pred_check
      _
    $region47: #{tpu_custom_call.1} parent=1 // pred_check_branch
      %83 = sbr.rel (0) target = $region49
    $region48: #{tpu_custom_call.1} parent=1 // pred_region
      %s85 = ssub.s32 6144, 6144
      %86 = vsyncadd [#allocation10], %s85
      %s87 = sshll.u32 [#allocation11], 4
      %s88 = int_to_ptr.vmem [resolvable:$true] %s87
      %93 = dma.hbm_to_vmem [thread:$0]  %s11, 6144, %s88, [#allocation10], 384, 384, 24
    $region49: #{tpu_custom_call.1} parent=1 // pred_fallthru
      _
    // Predicated region
    $region50: #{tpu_custom_call.1} parent=1 // pred_check
      _
    $region51: #{tpu_custom_call.1} parent=1 // pred_check_branch
      %95 = sbr.rel (0) target = $region53
    $region52: #{tpu_custom_call.1} parent=1 // pred_region
      _
    $region53: #{tpu_custom_call.1} parent=1 // pred_fallthru
      _
    // Predicated region
    $region54: #{tpu_custom_call.1} parent=1 // pred_check
      _
    $region55: #{tpu_custom_call.1} parent=1 // pred_check_branch
      %97 = sbr.rel (0) target = $region57
    $region56: #{tpu_custom_call.1} parent=1 // pred_region
      %98 = dma.done [#allocation4], 16
    $region57: #{tpu_custom_call.1} parent=1 // pred_fallthru
      _
    // Predicated region
    $region58: #{tpu_custom_call.1} parent=1 // pred_check
      _
    $region59: #{tpu_custom_call.1} parent=1 // pred_check_branch
      %100 = sbr.rel (0) target = $region61
    $region60: #{tpu_custom_call.1} parent=1 // pred_region
      %101 = dma.done [#allocation7], 512
    $region61: #{tpu_custom_call.1} parent=1 // pred_fallthru
      _
    // Predicated region
    $region62: #{tpu_custom_call.1} parent=1 // pred_check
      _
    $region63: #{tpu_custom_call.1} parent=1 // pred_check_branch
      %103 = sbr.rel (0) target = $region65
    $region64: #{tpu_custom_call.1} parent=1 // pred_region
      %104 = dma.done [#allocation7], 2048
    $region65: #{tpu_custom_call.1} parent=1 // pred_fallthru
      _
    // Predicated region
    $region66: #{tpu_custom_call.1} parent=1 // pred_check
      _
    $region67: #{tpu_custom_call.1} parent=1 // pred_check_branch
      %106 = sbr.rel (0) target = $region69
    $region68: #{tpu_custom_call.1} parent=1 // pred_region
      %107 = dma.done [#allocation10], 6144
    $region69: #{tpu_custom_call.1} parent=1 // pred_fallthru
      _
    // Predicated region
    $region70: #{tpu_custom_call.1} parent=1 // pred_check
      _
    $region71: #{tpu_custom_call.1} parent=1 // pred_check_branch
      %109 = sbr.rel (0) target = $region73
    $region72: #{tpu_custom_call.1} parent=1 // pred_region
      %110 = dma.done [#allocation10], 6144
    $region73: #{tpu_custom_call.1} parent=1 // pred_fallthru
      _
    %p112 = scmp.eq.s32.totalorder 0, 0
    // Predicated region
    $region74: #{tpu_custom_call.1} parent=1 // pred_check
      %p113 = pneg %p112
    $region75: #{tpu_custom_call.1} parent=1 // pred_check_branch
      %115 = sbr.rel (%p113) target = $region77
    $region76: #{tpu_custom_call.1} parent=1 // pred_region
      %116 = vst [vmem:[#allocation2] sm:$0xff] 0.0
    $region77: #{tpu_custom_call.1} parent=1 // pred_fallthru
      _
    %v117 = vld [vmem:[%s0] sm:$0xff]
    %v118 = vld [vmem:[%s0 + $0x8] sm:$0xff]
    %v119 = vld [vmem:[%s0 + $0x10] sm:$0xff]
    %v120 = vld [vmem:[%s0 + $0x18] sm:$0xff]
    %v121 = vld [vmem:[%s0 + $0x20] sm:$0xff]
    %v122 = vld [vmem:[%s0 + $0x28] sm:$0xff]
    %v123 = vld [vmem:[%s0 + $0x30] sm:$0xff]
    %v124 = vld [vmem:[%s0 + $0x38] sm:$0xff]
    %v125 = vld [vmem:[%s0 + $0x40] sm:$0xff]
    %v126 = vld [vmem:[%s0 + $0x48] sm:$0xff]
    %v127 = vld [vmem:[%s0 + $0x50] sm:$0xff]
    %v128 = vld [vmem:[%s0 + $0x58] sm:$0xff]
    %v129 = vld [vmem:[%s0 + $0x60] sm:$0xff]
    %v130 = vld [vmem:[%s0 + $0x68] sm:$0xff]
    %v131 = vld [vmem:[%s0 + $0x70] sm:$0xff]
    %v132 = vld [vmem:[%s0 + $0x78] sm:$0xff]
    %v133 = vld [vmem:[%s1] sm:$0xff]
    %v134 = vld [vmem:[%s1 + $0x8] sm:$0xff]
    %v135 = vld [vmem:[%s1 + $0x10] sm:$0xff]
    %v136 = vld [vmem:[%s1 + $0x18] sm:$0xff]
    %v137 = vld [vmem:[%s1 + $0x20] sm:$0xff]
    %v138 = vld [vmem:[%s1 + $0x28] sm:$0xff]
    %v139 = vld [vmem:[%s1 + $0x30] sm:$0xff]
    %v140 = vld [vmem:[%s1 + $0x38] sm:$0xff]
    %v141 = vld [vmem:[%s1 + $0x40] sm:$0xff]
    %v142 = vld [vmem:[%s1 + $0x48] sm:$0xff]
    %v143 = vld [vmem:[%s1 + $0x50] sm:$0xff]
    %v144 = vld [vmem:[%s1 + $0x58] sm:$0xff]
    %v145 = vld [vmem:[%s1 + $0x60] sm:$0xff]
    %v146 = vld [vmem:[%s1 + $0x68] sm:$0xff]
    %v147 = vld [vmem:[%s1 + $0x70] sm:$0xff]
    %v148 = vld [vmem:[%s1 + $0x78] sm:$0xff]
    %v149 = vld [vmem:[%s2] sm:$0xff]
    %v150 = vld [vmem:[%s2 + $0x8] sm:$0xff]
    %v151 = vld [vmem:[%s2 + $0x10] sm:$0xff]
    %v152 = vld [vmem:[%s2 + $0x18] sm:$0xff]
    %v153 = vld [vmem:[%s2 + $0x20] sm:$0xff]
    %v154 = vld [vmem:[%s2 + $0x28] sm:$0xff]
    %v155 = vld [vmem:[%s2 + $0x30] sm:$0xff]
    %v156 = vld [vmem:[%s2 + $0x38] sm:$0xff]
    %v157 = vld [vmem:[%s2 + $0x40] sm:$0xff]
    %v158 = vld [vmem:[%s2 + $0x48] sm:$0xff]
    %v159 = vld [vmem:[%s2 + $0x50] sm:$0xff]
    %v160 = vld [vmem:[%s2 + $0x58] sm:$0xff]
    %v161 = vld [vmem:[%s2 + $0x60] sm:$0xff]
    %v162 = vld [vmem:[%s2 + $0x68] sm:$0xff]
    %v163 = vld [vmem:[%s2 + $0x70] sm:$0xff]
    %v164 = vld [vmem:[%s2 + $0x78] sm:$0xff]
    %v165 = vld [vmem:[#allocation3] sm:$0x1]
    %v166 = vlaneseq
    %v167 = vand.u32 %v166, 127
    %168 = vset.pattern.permute.xlu0 0
    %169 = vperm.xlu0 %168, %v133
    %v170 = vpop.permute.xlu0 %169
    %171 = vset.pattern.permute.xlu0 0
    %172 = vperm.xlu0 %171, %v134
    %v173 = vpop.permute.xlu0 %172
    %174 = vset.pattern.permute.xlu0 0
    %175 = vperm.xlu0 %174, %v135
    %v176 = vpop.permute.xlu0 %175
    %177 = vset.pattern.permute.xlu0 0
    %178 = vperm.xlu0 %177, %v136
    %v179 = vpop.permute.xlu0 %178
    %180 = vset.pattern.permute.xlu0 0
    %181 = vperm.xlu0 %180, %v137
    %v182 = vpop.permute.xlu0 %181
    %183 = vset.pattern.permute.xlu0 0
    %184 = vperm.xlu0 %183, %v138
    %v185 = vpop.permute.xlu0 %184
    %186 = vset.pattern.permute.xlu0 0
    %187 = vperm.xlu0 %186, %v139
    %v188 = vpop.permute.xlu0 %187
    %189 = vset.pattern.permute.xlu0 0
    %190 = vperm.xlu0 %189, %v140
    %v191 = vpop.permute.xlu0 %190
    %192 = vset.pattern.permute.xlu0 0
    %193 = vperm.xlu0 %192, %v141
    %v194 = vpop.permute.xlu0 %193
    %195 = vset.pattern.permute.xlu0 0
    %196 = vperm.xlu0 %195, %v142
    %v197 = vpop.permute.xlu0 %196
    %198 = vset.pattern.permute.xlu0 0
    %199 = vperm.xlu0 %198, %v143
    %v200 = vpop.permute.xlu0 %199
    %201 = vset.pattern.permute.xlu0 0
    %202 = vperm.xlu0 %201, %v144
    %v203 = vpop.permute.xlu0 %202
    %204 = vset.pattern.permute.xlu0 0
    %205 = vperm.xlu0 %204, %v145
    %v206 = vpop.permute.xlu0 %205
    %207 = vset.pattern.permute.xlu0 0
    %208 = vperm.xlu0 %207, %v146
    %v209 = vpop.permute.xlu0 %208
    %210 = vset.pattern.permute.xlu0 0
    %211 = vperm.xlu0 %210, %v147
    %v212 = vpop.permute.xlu0 %211
    %213 = vset.pattern.permute.xlu0 0
    %214 = vperm.xlu0 %213, %v148
    %v215 = vpop.permute.xlu0 %214
    %vm216 = vcmp.eq.s32.totalorder %v167, %v170
    %vm217 = vcmp.eq.s32.totalorder %v167, %v173
    %vm218 = vcmp.eq.s32.totalorder %v167, %v176
    %vm219 = vcmp.eq.s32.totalorder %v167, %v179
    %vm220 = vcmp.eq.s32.totalorder %v167, %v182
    %vm221 = vcmp.eq.s32.totalorder %v167, %v185
    %vm222 = vcmp.eq.s32.totalorder %v167, %v188
    %vm223 = vcmp.eq.s32.totalorder %v167, %v191
    %vm224 = vcmp.eq.s32.totalorder %v167, %v194
    %vm225 = vcmp.eq.s32.totalorder %v167, %v197
    %vm226 = vcmp.eq.s32.totalorder %v167, %v200
    %vm227 = vcmp.eq.s32.totalorder %v167, %v203
    %vm228 = vcmp.eq.s32.totalorder %v167, %v206
    %vm229 = vcmp.eq.s32.totalorder %v167, %v209
    %vm230 = vcmp.eq.s32.totalorder %v167, %v212
    %vm231 = vcmp.eq.s32.totalorder %v167, %v215
    %v232 = vsel %vm216, 1, 0
    %v233 = vsel %vm217, 1, 0
    %v234 = vsel %vm218, 1, 0
    %v235 = vsel %vm219, 1, 0
    %v236 = vsel %vm220, 1, 0
    %v237 = vsel %vm221, 1, 0
    %v238 = vsel %vm222, 1, 0
    %v239 = vsel %vm223, 1, 0
    %v240 = vsel %vm224, 1, 0
    %v241 = vsel %vm225, 1, 0
    %v242 = vsel %vm226, 1, 0
    %v243 = vsel %vm227, 1, 0
    %v244 = vsel %vm228, 1, 0
    %v245 = vsel %vm229, 1, 0
    %v246 = vsel %vm230, 1, 0
    %v247 = vsel %vm231, 1, 0
    %v248 = vcvt.s32.f32 %v232
    %v249 = vcvt.s32.f32 %v233
    %v250 = vcvt.s32.f32 %v234
    %v251 = vcvt.s32.f32 %v235
    %v252 = vcvt.s32.f32 %v236
    %v253 = vcvt.s32.f32 %v237
    %v254 = vcvt.s32.f32 %v238
    %v255 = vcvt.s32.f32 %v239
    %v256 = vcvt.s32.f32 %v240
    %v257 = vcvt.s32.f32 %v241
    %v258 = vcvt.s32.f32 %v242
    %v259 = vcvt.s32.f32 %v243
    %v260 = vcvt.s32.f32 %v244
    %v261 = vcvt.s32.f32 %v245
    %v262 = vcvt.s32.f32 %v246
    %v263 = vcvt.s32.f32 %v247
    %v264 = vpack.c.bf16 %v249, %v248
    %v265 = vpack.c.bf16 %v251, %v250
    %v266 = vpack.c.bf16 %v253, %v252
    %v267 = vpack.c.bf16 %v255, %v254
    %v268 = vpack.c.bf16 %v257, %v256
    %v269 = vpack.c.bf16 %v259, %v258
    %v270 = vpack.c.bf16 %v261, %v260
    %v271 = vpack.c.bf16 %v263, %v262
    %v272 = vld [vmem:[#allocation6] sm:$0xff]
    %v273 = vld [vmem:[#allocation6 + $0x8] sm:$0xff]
    %v274 = vld [vmem:[#allocation6 + $0x10] sm:$0xff]
    %v275 = vld [vmem:[#allocation6 + $0x18] sm:$0xff]
    %v276 = vpack.c.bf16 %v274, %v272
    %v277 = vpack.c.bf16 %v275, %v273
    %vm278 = vcmask 130048
    %v280 = vsel %vm278, %v264, 0
    %v283 = vsel %vm278, %v265, 0
    %v286 = vsel %vm278, %v266, 0
    %v289 = vsel %vm278, %v267, 0
    %v292 = vsel %vm278, %v268, 0
    %v295 = vsel %vm278, %v269, 0
    %v298 = vsel %vm278, %v270, 0
    %v301 = vsel %vm278, %v271, 0
    %303 = vmatprep.subr.bf16.mxu0 %v277
    %304 = vmatpush1.bf16.msra.mxu0 %v276
    %305 = vmatprep.subr.bf16.mxu0 0
    %306 = vmatpush1.bf16.msra.mxu0 0
    %307 = vmatprep.subr.bf16.mxu0 0
    %308 = vmatpush1.bf16.msra.mxu0 0
    %309 = vmatprep.subr.bf16.mxu0 0
    %310 = vmatpush1.bf16.msra.mxu0 0
    %311 = vmatprep.subr.bf16.mxu0 0
    %312 = vmatpush1.bf16.msra.mxu0 0
    %313 = vmatprep.subr.bf16.mxu0 0
    %314 = vmatpush1.bf16.msra.mxu0 0
    %315 = vmatprep.subr.bf16.mxu0 0
    %316 = vmatpush1.bf16.msra.mxu0 0
    %317 = vmatprep.subr.bf16.mxu0 0
    %318 = vmatpush1.bf16.msra.mxu0 0
    %319 = vmatprep.subr.bf16.mxu0 0
    %320 = vmatpush1.bf16.msra.mxu0 0
    %321 = vmatprep.subr.bf16.mxu0 0
    %322 = vmatpush1.bf16.msra.mxu0 0
    %323 = vmatprep.subr.bf16.mxu0 0
    %324 = vmatpush1.bf16.msra.mxu0 0
    %325 = vmatprep.subr.bf16.mxu0 0
    %326 = vmatpush1.bf16.msra.mxu0 0
    %327 = vmatprep.subr.bf16.mxu0 0
    %328 = vmatpush1.bf16.msra.mxu0 0
    %329 = vmatprep.subr.bf16.mxu0 0
    %330 = vmatpush1.bf16.msra.mxu0 0
    %331 = vmatprep.subr.bf16.mxu0 0
    %332 = vmatpush1.bf16.msra.mxu0 0
    %333 = vmatprep.subr.bf16.mxu0 0
    %334 = vmatpush1.bf16.msra.mxu0 0
    %335 = vmatprep.mubr.bf16.mxu0 0
    %336 = vmatmul.mubr.bf16.gmra.mrb[0].mxu0 %v280
    %v337 = vpop.f32.mrb[0].mxu0
    %v338 = vadd.f32 0.0, %v337
    %v339 = vpop.f32.mrb[0].mxu0
    %v340 = vadd.f32 0.0, %v339
    %v341 = vpop.f32.mrb[0].mxu0
    %v342 = vadd.f32 0.0, %v341
    %v343 = vpop.f32.mrb[0].mxu0
    %v344 = vadd.f32 0.0, %v343
    %345 = vmatprep.mubr.bf16.mxu0 0
    %346 = vmatmul.mubr.bf16.gmra.mrb[0].mxu0 %v283
    %v347 = vpop.f32.mrb[0].mxu0
    %v348 = vadd.f32 0.0, %v347
    %v349 = vpop.f32.mrb[0].mxu0
    %v350 = vadd.f32 0.0, %v349
    %v351 = vpop.f32.mrb[0].mxu0
    %v352 = vadd.f32 0.0, %v351
    %v353 = vpop.f32.mrb[0].mxu0
    %v354 = vadd.f32 0.0, %v353
    %355 = vmatprep.mubr.bf16.mxu0 0
    %356 = vmatmul.mubr.bf16.gmra.mrb[0].mxu0 %v286
    %v357 = vpop.f32.mrb[0].mxu0
    %v358 = vadd.f32 0.0, %v357
    %v359 = vpop.f32.mrb[0].mxu0
    %v360 = vadd.f32 0.0, %v359
    %v361 = vpop.f32.mrb[0].mxu0
    %v362 = vadd.f32 0.0, %v361
    %v363 = vpop.f32.mrb[0].mxu0
    %v364 = vadd.f32 0.0, %v363
    %365 = vmatprep.mubr.bf16.mxu0 0
    %366 = vmatmul.mubr.bf16.gmra.mrb[0].mxu0 %v289
    %v367 = vpop.f32.mrb[0].mxu0
    %v368 = vadd.f32 0.0, %v367
    %v369 = vpop.f32.mrb[0].mxu0
    %v370 = vadd.f32 0.0, %v369
    %v371 = vpop.f32.mrb[0].mxu0
    %v372 = vadd.f32 0.0, %v371
    %v373 = vpop.f32.mrb[0].mxu0
    %v374 = vadd.f32 0.0, %v373
    %375 = vmatprep.mubr.bf16.mxu0 0
    %376 = vmatmul.mubr.bf16.gmra.mrb[0].mxu0 %v292
    %v377 = vpop.f32.mrb[0].mxu0
    %v378 = vadd.f32 0.0, %v377
    %v379 = vpop.f32.mrb[0].mxu0
    %v380 = vadd.f32 0.0, %v379
    %v381 = vpop.f32.mrb[0].mxu0
    %v382 = vadd.f32 0.0, %v381
    %v383 = vpop.f32.mrb[0].mxu0
    %v384 = vadd.f32 0.0, %v383
    %385 = vmatprep.mubr.bf16.mxu0 0
    %386 = vmatmul.mubr.bf16.gmra.mrb[0].mxu0 %v295
    %v387 = vpop.f32.mrb[0].mxu0
    %v388 = vadd.f32 0.0, %v387
    %v389 = vpop.f32.mrb[0].mxu0
    %v390 = vadd.f32 0.0, %v389
    %v391 = vpop.f32.mrb[0].mxu0
    %v392 = vadd.f32 0.0, %v391
    %v393 = vpop.f32.mrb[0].mxu0
    %v394 = vadd.f32 0.0, %v393
    %395 = vmatprep.mubr.bf16.mxu0 0
    %396 = vmatmul.mubr.bf16.gmra.mrb[0].mxu0 %v298
    %v397 = vpop.f32.mrb[0].mxu0
    %v398 = vadd.f32 0.0, %v397
    %v399 = vpop.f32.mrb[0].mxu0
    %v400 = vadd.f32 0.0, %v399
    %v401 = vpop.f32.mrb[0].mxu0
    %v402 = vadd.f32 0.0, %v401
    %v403 = vpop.f32.mrb[0].mxu0
    %v404 = vadd.f32 0.0, %v403
    %405 = vmatprep.mubr.bf16.mxu0 0
    %406 = vmatmul.mubr.bf16.gmra.mrb[0].mxu0 %v301
    %v407 = vpop.f32.mrb[0].mxu0
    %v408 = vadd.f32 0.0, %v407
    %v409 = vpop.f32.mrb[0].mxu0
    %v410 = vadd.f32 0.0, %v409
    %v411 = vpop.f32.mrb[0].mxu0
    %v412 = vadd.f32 0.0, %v411
    %v413 = vpop.f32.mrb[0].mxu0
    %v414 = vadd.f32 0.0, %v413
    %415 = vdwg.mxu0
    %416 = vset.pattern.permute.xlu0 0
    %417 = vperm.xlu0 %416, %v149
    %v418 = vpop.permute.xlu0 %417
    %419 = vset.pattern.permute.xlu0 0
    %420 = vperm.xlu0 %419, %v150
    %v421 = vpop.permute.xlu0 %420
    %422 = vset.pattern.permute.xlu0 0
    %423 = vperm.xlu0 %422, %v151
    %v424 = vpop.permute.xlu0 %423
    %425 = vset.pattern.permute.xlu0 0
    %426 = vperm.xlu0 %425, %v152
    %v427 = vpop.permute.xlu0 %426
    %428 = vset.pattern.permute.xlu0 0
    %429 = vperm.xlu0 %428, %v153
    %v430 = vpop.permute.xlu0 %429
    %431 = vset.pattern.permute.xlu0 0
    %432 = vperm.xlu0 %431, %v154
    %v433 = vpop.permute.xlu0 %432
    %434 = vset.pattern.permute.xlu0 0
    %435 = vperm.xlu0 %434, %v155
    %v436 = vpop.permute.xlu0 %435
    %437 = vset.pattern.permute.xlu0 0
    %438 = vperm.xlu0 %437, %v156
    %v439 = vpop.permute.xlu0 %438
    %440 = vset.pattern.permute.xlu0 0
    %441 = vperm.xlu0 %440, %v157
    %v442 = vpop.permute.xlu0 %441
    %443 = vset.pattern.permute.xlu0 0
    %444 = vperm.xlu0 %443, %v158
    %v445 = vpop.permute.xlu0 %444
    %446 = vset.pattern.permute.xlu0 0
    %447 = vperm.xlu0 %446, %v159
    %v448 = vpop.permute.xlu0 %447
    %449 = vset.pattern.permute.xlu0 0
    %450 = vperm.xlu0 %449, %v160
    %v451 = vpop.permute.xlu0 %450
    %452 = vset.pattern.permute.xlu0 0
    %453 = vperm.xlu0 %452, %v161
    %v454 = vpop.permute.xlu0 %453
    %455 = vset.pattern.permute.xlu0 0
    %456 = vperm.xlu0 %455, %v162
    %v457 = vpop.permute.xlu0 %456
    %458 = vset.pattern.permute.xlu0 0
    %459 = vperm.xlu0 %458, %v163
    %v460 = vpop.permute.xlu0 %459
    %461 = vset.pattern.permute.xlu0 0
    %462 = vperm.xlu0 %461, %v164
    %v463 = vpop.permute.xlu0 %462
    %vm464 = vcmp.eq.s32.totalorder %v167, %v418
    %vm465 = vcmp.eq.s32.totalorder %v167, %v421
    %vm466 = vcmp.eq.s32.totalorder %v167, %v424
    %vm467 = vcmp.eq.s32.totalorder %v167, %v427
    %vm468 = vcmp.eq.s32.totalorder %v167, %v430
    %vm469 = vcmp.eq.s32.totalorder %v167, %v433
    %vm470 = vcmp.eq.s32.totalorder %v167, %v436
    %vm471 = vcmp.eq.s32.totalorder %v167, %v439
    %vm472 = vcmp.eq.s32.totalorder %v167, %v442
    %vm473 = vcmp.eq.s32.totalorder %v167, %v445
    %vm474 = vcmp.eq.s32.totalorder %v167, %v448
    %vm475 = vcmp.eq.s32.totalorder %v167, %v451
    %vm476 = vcmp.eq.s32.totalorder %v167, %v454
    %vm477 = vcmp.eq.s32.totalorder %v167, %v457
    %vm478 = vcmp.eq.s32.totalorder %v167, %v460
    %vm479 = vcmp.eq.s32.totalorder %v167, %v463
    %v480 = vsel %vm464, 1, 0
    %v481 = vsel %vm465, 1, 0
    %v482 = vsel %vm466, 1, 0
    %v483 = vsel %vm467, 1, 0
    %v484 = vsel %vm468, 1, 0
    %v485 = vsel %vm469, 1, 0
    %v486 = vsel %vm470, 1, 0
    %v487 = vsel %vm471, 1, 0
    %v488 = vsel %vm472, 1, 0
    %v489 = vsel %vm473, 1, 0
    %v490 = vsel %vm474, 1, 0
    %v491 = vsel %vm475, 1, 0
    %v492 = vsel %vm476, 1, 0
    %v493 = vsel %vm477, 1, 0
    %v494 = vsel %vm478, 1, 0
    %v495 = vsel %vm479, 1, 0
    %v496 = vcvt.s32.f32 %v480
    %v497 = vcvt.s32.f32 %v481
    %v498 = vcvt.s32.f32 %v482
    %v499 = vcvt.s32.f32 %v483
    %v500 = vcvt.s32.f32 %v484
    %v501 = vcvt.s32.f32 %v485
    %v502 = vcvt.s32.f32 %v486
    %v503 = vcvt.s32.f32 %v487
    %v504 = vcvt.s32.f32 %v488
    %v505 = vcvt.s32.f32 %v489
    %v506 = vcvt.s32.f32 %v490
    %v507 = vcvt.s32.f32 %v491
    %v508 = vcvt.s32.f32 %v492
    %v509 = vcvt.s32.f32 %v493
    %v510 = vcvt.s32.f32 %v494
    %v511 = vcvt.s32.f32 %v495
    %v512 = vpack.c.bf16 %v497, %v496
    %v513 = vpack.c.bf16 %v499, %v498
    %v514 = vpack.c.bf16 %v501, %v500
    %v515 = vpack.c.bf16 %v503, %v502
    %v516 = vpack.c.bf16 %v505, %v504
    %v517 = vpack.c.bf16 %v507, %v506
    %v518 = vpack.c.bf16 %v509, %v508
    %v519 = vpack.c.bf16 %v511, %v510
    %v520 = vld [vmem:[%s6] sm:$0xff]
    %v521 = vpack.c.bf16 %v520, %v520
    %vm522 = vcmask 64512
    %v524 = vsel %vm522, %v512, 0
    %v527 = vsel %vm522, %v513, 0
    %v530 = vsel %vm522, %v514, 0
    %v533 = vsel %vm522, %v515, 0
    %v536 = vsel %vm522, %v516, 0
    %v539 = vsel %vm522, %v517, 0
    %v542 = vsel %vm522, %v518, 0
    %v545 = vsel %vm522, %v519, 0
    %vm547 = vcmask 1043456
    %v549 = vsel %vm547, %v521, 0
    %551 = vmatprep.subr.bf16.mxu0 0
    %552 = vmatpush1.bf16.msra.mxu0 %v549
    %553 = vmatprep.subr.bf16.mxu0 0
    %554 = vmatpush1.bf16.msra.mxu0 0
    %555 = vmatprep.subr.bf16.mxu0 0
    %556 = vmatpush1.bf16.msra.mxu0 0
    %557 = vmatprep.subr.bf16.mxu0 0
    %558 = vmatpush1.bf16.msra.mxu0 0
    %559 = vmatprep.subr.bf16.mxu0 0
    %560 = vmatpush1.bf16.msra.mxu0 0
    %561 = vmatprep.subr.bf16.mxu0 0
    %562 = vmatpush1.bf16.msra.mxu0 0
    %563 = vmatprep.subr.bf16.mxu0 0
    %564 = vmatpush1.bf16.msra.mxu0 0
    %565 = vmatprep.subr.bf16.mxu0 0
    %566 = vmatpush1.bf16.msra.mxu0 0
    %567 = vmatprep.subr.bf16.mxu0 0
    %568 = vmatpush1.bf16.msra.mxu0 0
    %569 = vmatprep.subr.bf16.mxu0 0
    %570 = vmatpush1.bf16.msra.mxu0 0
    %571 = vmatprep.subr.bf16.mxu0 0
    %572 = vmatpush1.bf16.msra.mxu0 0
    %573 = vmatprep.subr.bf16.mxu0 0
    %574 = vmatpush1.bf16.msra.mxu0 0
    %575 = vmatprep.subr.bf16.mxu0 0
    %576 = vmatpush1.bf16.msra.mxu0 0
    %577 = vmatprep.subr.bf16.mxu0 0
    %578 = vmatpush1.bf16.msra.mxu0 0
    %579 = vmatprep.subr.bf16.mxu0 0
    %580 = vmatpush1.bf16.msra.mxu0 0
    %581 = vmatprep.subr.bf16.mxu0 0
    %582 = vmatpush1.bf16.msra.mxu0 0
    %583 = vmatprep.mubr.bf16.mxu0 0
    %584 = vmatmul.mubr.bf16.gmra.mrb[0].mxu0 %v524
    %v585 = vpop.f32.mrb[0].mxu0
    %v586 = vadd.f32 0.0, %v585
    %v587 = vpop.f32.mrb[0].mxu0
    %v588 = vpop.f32.mrb[0].mxu0
    %v589 = vadd.f32 0.0, %v588
    %v590 = vpop.f32.mrb[0].mxu0
    %591 = vmatprep.mubr.bf16.mxu0 0
    %592 = vmatmul.mubr.bf16.gmra.mrb[0].mxu0 %v527
    %v593 = vpop.f32.mrb[0].mxu0
    %v594 = vadd.f32 0.0, %v593
    %v595 = vpop.f32.mrb[0].mxu0
    %v596 = vpop.f32.mrb[0].mxu0
    %v597 = vadd.f32 0.0, %v596
    %v598 = vpop.f32.mrb[0].mxu0
    %599 = vmatprep.mubr.bf16.mxu0 0
    %600 = vmatmul.mubr.bf16.gmra.mrb[0].mxu0 %v530
    %v601 = vpop.f32.mrb[0].mxu0
    %v602 = vadd.f32 0.0, %v601
    %v603 = vpop.f32.mrb[0].mxu0
    %v604 = vpop.f32.mrb[0].mxu0
    %v605 = vadd.f32 0.0, %v604
    %v606 = vpop.f32.mrb[0].mxu0
    %607 = vmatprep.mubr.bf16.mxu0 0
    %608 = vmatmul.mubr.bf16.gmra.mrb[0].mxu0 %v533
    %v609 = vpop.f32.mrb[0].mxu0
    %v610 = vadd.f32 0.0, %v609
    %v611 = vpop.f32.mrb[0].mxu0
    %v612 = vpop.f32.mrb[0].mxu0
    %v613 = vadd.f32 0.0, %v612
    %v614 = vpop.f32.mrb[0].mxu0
    %615 = vmatprep.mubr.bf16.mxu0 0
    %616 = vmatmul.mubr.bf16.gmra.mrb[0].mxu0 %v536
    %v617 = vpop.f32.mrb[0].mxu0
    %v618 = vadd.f32 0.0, %v617
    %v619 = vpop.f32.mrb[0].mxu0
    %v620 = vpop.f32.mrb[0].mxu0
    %v621 = vadd.f32 0.0, %v620
    %v622 = vpop.f32.mrb[0].mxu0
    %623 = vmatprep.mubr.bf16.mxu0 0
    %624 = vmatmul.mubr.bf16.gmra.mrb[0].mxu0 %v539
    %v625 = vpop.f32.mrb[0].mxu0
    %v626 = vadd.f32 0.0, %v625
    %v627 = vpop.f32.mrb[0].mxu0
    %v628 = vpop.f32.mrb[0].mxu0
    %v629 = vadd.f32 0.0, %v628
    %v630 = vpop.f32.mrb[0].mxu0
    %631 = vmatprep.mubr.bf16.mxu0 0
    %632 = vmatmul.mubr.bf16.gmra.mrb[0].mxu0 %v542
    %v633 = vpop.f32.mrb[0].mxu0
    %v634 = vadd.f32 0.0, %v633
    %v635 = vpop.f32.mrb[0].mxu0
    %v636 = vpop.f32.mrb[0].mxu0
    %v637 = vadd.f32 0.0, %v636
    %v638 = vpop.f32.mrb[0].mxu0
    %639 = vmatprep.mubr.bf16.mxu0 0
    %640 = vmatmul.mubr.bf16.gmra.mrb[0].mxu0 %v545
    %v641 = vpop.f32.mrb[0].mxu0
    %v642 = vadd.f32 0.0, %v641
    %v643 = vpop.f32.mrb[0].mxu0
    %v644 = vpop.f32.mrb[0].mxu0
    %v645 = vadd.f32 0.0, %v644
    %v646 = vpop.f32.mrb[0].mxu0
    %647 = vdwg.mxu0
    %v648 = vpack.c.bf16 %v118, %v117
    %v649 = vpack.c.bf16 %v120, %v119
    %v650 = vpack.c.bf16 %v122, %v121
    %v651 = vpack.c.bf16 %v124, %v123
    %v652 = vpack.c.bf16 %v126, %v125
    %v653 = vpack.c.bf16 %v128, %v127
    %v654 = vpack.c.bf16 %v130, %v129
    %v655 = vpack.c.bf16 %v132, %v131
    %v656 = vld [vmem:[%s7] sm:$0xff]
    %v657 = vld [vmem:[%s7 + $0x8] sm:$0xff]
    %v658 = vld [vmem:[%s7 + $0x10] sm:$0xff]
    %v659 = vld [vmem:[%s7 + $0x18] sm:$0xff]
    %v660 = vld [vmem:[%s7 + $0x20] sm:$0xff]
    %v661 = vld [vmem:[%s7 + $0x28] sm:$0xff]
    %v662 = vld [vmem:[%s7 + $0x30] sm:$0xff]
    %v663 = vld [vmem:[%s7 + $0x38] sm:$0xff]
    %v664 = vld [vmem:[%s7 + $0x40] sm:$0xff]
    %v665 = vld [vmem:[%s7 + $0x48] sm:$0xff]
    %v666 = vld [vmem:[%s7 + $0x50] sm:$0xff]
    %v667 = vld [vmem:[%s7 + $0x58] sm:$0xff]
    %v668 = vld [vmem:[%s7 + $0x60] sm:$0xff]
    %v669 = vld [vmem:[%s7 + $0x68] sm:$0xff]
    %v670 = vld [vmem:[%s7 + $0x70] sm:$0xff]
    %v671 = vld [vmem:[%s7 + $0x78] sm:$0xff]
    %v672 = vpack.c.bf16 %v657, %v656
    %v673 = vpack.c.bf16 %v659, %v658
    %v674 = vpack.c.bf16 %v661, %v660
    %v675 = vpack.c.bf16 %v663, %v662
    %v676 = vpack.c.bf16 %v665, %v664
    %v677 = vpack.c.bf16 %v667, %v666
    %v678 = vpack.c.bf16 %v669, %v668
    %v679 = vpack.c.bf16 %v671, %v670
    %680 = vmatprep.subr.bf16.mxu0 0
    %681 = vmatpush1.bf16.msra.mxu0 %v672
    %682 = vmatprep.subr.bf16.mxu0 0
    %683 = vmatpush1.bf16.msra.mxu0 %v673
    %684 = vmatprep.subr.bf16.mxu0 0
    %685 = vmatpush1.bf16.msra.mxu0 %v674
    %686 = vmatprep.subr.bf16.mxu0 0
    %687 = vmatpush1.bf16.msra.mxu0 %v675
    %688 = vmatprep.subr.bf16.mxu0 0
    %689 = vmatpush1.bf16.msra.mxu0 %v676
    %690 = vmatprep.subr.bf16.mxu0 0
    %691 = vmatpush1.bf16.msra.mxu0 %v677
    %692 = vmatprep.subr.bf16.mxu0 0
    %693 = vmatpush1.bf16.msra.mxu0 %v678
    %694 = vmatprep.subr.bf16.mxu0 0
    %695 = vmatpush1.bf16.msra.mxu0 %v679
    %696 = vmatprep.subr.bf16.mxu0 0
    %697 = vmatpush1.bf16.msra.mxu0 0
    %698 = vmatprep.subr.bf16.mxu0 0
    %699 = vmatpush1.bf16.msra.mxu0 0
    %700 = vmatprep.subr.bf16.mxu0 0
    %701 = vmatpush1.bf16.msra.mxu0 0
    %702 = vmatprep.subr.bf16.mxu0 0
    %703 = vmatpush1.bf16.msra.mxu0 0
    %704 = vmatprep.subr.bf16.mxu0 0
    %705 = vmatpush1.bf16.msra.mxu0 0
    %706 = vmatprep.subr.bf16.mxu0 0
    %707 = vmatpush1.bf16.msra.mxu0 0
    %708 = vmatprep.subr.bf16.mxu0 0
    %709 = vmatpush1.bf16.msra.mxu0 0
    %710 = vmatprep.subr.bf16.mxu0 0
    %711 = vmatpush1.bf16.msra.mxu0 0
    %712 = vmatprep.mubr.bf16.mxu0 0
    %713 = vmatmul.mubr.bf16.gmra.mrb[0].mxu0 %v648
    %v714 = vpop.f32.mrb[0].mxu0
    %v715 = vadd.f32 %v340, %v714
    %v716 = vpop.f32.mrb[0].mxu0
    %v717 = vpop.f32.mrb[0].mxu0
    %v718 = vadd.f32 %v344, %v717
    %v719 = vpop.f32.mrb[0].mxu0
    %720 = vmatprep.mubr.bf16.mxu0 0
    %721 = vmatmul.mubr.bf16.gmra.mrb[0].mxu0 %v649
    %v722 = vpop.f32.mrb[0].mxu0
    %v723 = vadd.f32 %v350, %v722
    %v724 = vpop.f32.mrb[0].mxu0
    %v725 = vpop.f32.mrb[0].mxu0
    %v726 = vadd.f32 %v354, %v725
    %v727 = vpop.f32.mrb[0].mxu0
    %728 = vmatprep.mubr.bf16.mxu0 0
    %729 = vmatmul.mubr.bf16.gmra.mrb[0].mxu0 %v650
    %v730 = vpop.f32.mrb[0].mxu0
    %v731 = vadd.f32 %v360, %v730
    %v732 = vpop.f32.mrb[0].mxu0
    %v733 = vpop.f32.mrb[0].mxu0
    %v734 = vadd.f32 %v364, %v733
    %v735 = vpop.f32.mrb[0].mxu0
    %736 = vmatprep.mubr.bf16.mxu0 0
    %737 = vmatmul.mubr.bf16.gmra.mrb[0].mxu0 %v651
    %v738 = vpop.f32.mrb[0].mxu0
    %v739 = vadd.f32 %v370, %v738
    %v740 = vpop.f32.mrb[0].mxu0
    %v741 = vpop.f32.mrb[0].mxu0
    %v742 = vadd.f32 %v374, %v741
    %v743 = vpop.f32.mrb[0].mxu0
    %744 = vmatprep.mubr.bf16.mxu0 0
    %745 = vmatmul.mubr.bf16.gmra.mrb[0].mxu0 %v652
    %v746 = vpop.f32.mrb[0].mxu0
    %v747 = vadd.f32 %v380, %v746
    %v748 = vpop.f32.mrb[0].mxu0
    %v749 = vpop.f32.mrb[0].mxu0
    %v750 = vadd.f32 %v384, %v749
    %v751 = vpop.f32.mrb[0].mxu0
    %752 = vmatprep.mubr.bf16.mxu0 0
    %753 = vmatmul.mubr.bf16.gmra.mrb[0].mxu0 %v653
    %v754 = vpop.f32.mrb[0].mxu0
    %v755 = vadd.f32 %v390, %v754
    %v756 = vpop.f32.mrb[0].mxu0
    %v757 = vpop.f32.mrb[0].mxu0
    %v758 = vadd.f32 %v394, %v757
    %v759 = vpop.f32.mrb[0].mxu0
    %760 = vmatprep.mubr.bf16.mxu0 0
    %761 = vmatmul.mubr.bf16.gmra.mrb[0].mxu0 %v654
    %v762 = vpop.f32.mrb[0].mxu0
    %v763 = vadd.f32 %v400, %v762
    %v764 = vpop.f32.mrb[0].mxu0
    %v765 = vpop.f32.mrb[0].mxu0
    %v766 = vadd.f32 %v404, %v765
    %v767 = vpop.f32.mrb[0].mxu0
    %768 = vmatprep.mubr.bf16.mxu0 0
    %769 = vmatmul.mubr.bf16.gmra.mrb[0].mxu0 %v655
    %v770 = vpop.f32.mrb[0].mxu0
    %v771 = vadd.f32 %v410, %v770
    %v772 = vpop.f32.mrb[0].mxu0
    %v773 = vpop.f32.mrb[0].mxu0
    %v774 = vadd.f32 %v414, %v773
    %v775 = vpop.f32.mrb[0].mxu0
    %776 = vdwg.mxu0
    %v777 = vadd.f32 %v715, %v586
    %v778 = vadd.f32 %v718, %v589
    %v779 = vadd.f32 %v723, %v594
    %v780 = vadd.f32 %v726, %v597
    %v781 = vadd.f32 %v731, %v602
    %v782 = vadd.f32 %v734, %v605
    %v783 = vadd.f32 %v739, %v610
    %v784 = vadd.f32 %v742, %v613
    %v785 = vadd.f32 %v747, %v618
    %v786 = vadd.f32 %v750, %v621
    %v787 = vadd.f32 %v755, %v626
    %v788 = vadd.f32 %v758, %v629
    %v789 = vadd.f32 %v763, %v634
    %v790 = vadd.f32 %v766, %v637
    %v791 = vadd.f32 %v771, %v642
    %v792 = vadd.f32 %v774, %v645
    %v793 = vmax.f32 %v777, 0.0
    %v794 = vmax.f32 %v778, 0.0
    %v795 = vmax.f32 %v779, 0.0
    %v796 = vmax.f32 %v780, 0.0
    %v797 = vmax.f32 %v781, 0.0
    %v798 = vmax.f32 %v782, 0.0
    %v799 = vmax.f32 %v783, 0.0
    %v800 = vmax.f32 %v784, 0.0
    %v801 = vmax.f32 %v785, 0.0
    %v802 = vmax.f32 %v786, 0.0
    %v803 = vmax.f32 %v787, 0.0
    %v804 = vmax.f32 %v788, 0.0
    %v805 = vmax.f32 %v789, 0.0
    %v806 = vmax.f32 %v790, 0.0
    %v807 = vmax.f32 %v791, 0.0
    %v808 = vmax.f32 %v792, 0.0
    %v809 = vld [vmem:[%s8] sm:$0x3]
    %v810 = vlaneseq
    %v811 = vshrl.u32 %v810, 7
    %v812 = vsub.s32 0, %v811
    %v813 = vrot.slane %v809, %v812
    %v814 = vmul.f32 %v793, %v813
    %v815 = vmul.f32 %v794, %v813
    %v816 = vmul.f32 %v795, %v813
    %v817 = vmul.f32 %v796, %v813
    %v818 = vmul.f32 %v797, %v813
    %v819 = vmul.f32 %v798, %v813
    %v820 = vmul.f32 %v799, %v813
    %v821 = vmul.f32 %v800, %v813
    %v822 = vmul.f32 %v801, %v813
    %v823 = vmul.f32 %v802, %v813
    %v824 = vmul.f32 %v803, %v813
    %v825 = vmul.f32 %v804, %v813
    %v826 = vmul.f32 %v805, %v813
    %v827 = vmul.f32 %v806, %v813
    %v828 = vmul.f32 %v807, %v813
    %v829 = vmul.f32 %v808, %v813
    %830 = vadd.xlane.f32.xlu0 %v814
    %v831 = vpop.xlane.xlu0 %830
    %832 = vadd.xlane.f32.xlu0 %v815
    %v833 = vpop.xlane.xlu0 %832
    %834 = vadd.xlane.f32.xlu0 %v816
    %v835 = vpop.xlane.xlu0 %834
    %836 = vadd.xlane.f32.xlu0 %v817
    %v837 = vpop.xlane.xlu0 %836
    %838 = vadd.xlane.f32.xlu0 %v818
    %v839 = vpop.xlane.xlu0 %838
    %840 = vadd.xlane.f32.xlu0 %v819
    %v841 = vpop.xlane.xlu0 %840
    %842 = vadd.xlane.f32.xlu0 %v820
    %v843 = vpop.xlane.xlu0 %842
    %844 = vadd.xlane.f32.xlu0 %v821
    %v845 = vpop.xlane.xlu0 %844
    %846 = vadd.xlane.f32.xlu0 %v822
    %v847 = vpop.xlane.xlu0 %846
    %848 = vadd.xlane.f32.xlu0 %v823
    %v849 = vpop.xlane.xlu0 %848
    %850 = vadd.xlane.f32.xlu0 %v824
    %v851 = vpop.xlane.xlu0 %850
    %852 = vadd.xlane.f32.xlu0 %v825
    %v853 = vpop.xlane.xlu0 %852
    %854 = vadd.xlane.f32.xlu0 %v826
    %v855 = vpop.xlane.xlu0 %854
    %856 = vadd.xlane.f32.xlu0 %v827
    %v857 = vpop.xlane.xlu0 %856
    %858 = vadd.xlane.f32.xlu0 %v828
    %v859 = vpop.xlane.xlu0 %858
    %860 = vadd.xlane.f32.xlu0 %v829
    %v861 = vpop.xlane.xlu0 %860
    %v862 = vlaneseq
    %v863 = vshrl.u32 %v862, 7
    %v864 = vsub.s32 1, %v863
    %v865 = vrot.slane %v809, %v864
    %v866 = vadd.f32 %v831, %v865
    %v867 = vadd.f32 %v833, %v865
    %v868 = vadd.f32 %v835, %v865
    %v869 = vadd.f32 %v837, %v865
    %v870 = vadd.f32 %v839, %v865
    %v871 = vadd.f32 %v841, %v865
    %v872 = vadd.f32 %v843, %v865
    %v873 = vadd.f32 %v845, %v865
    %v874 = vadd.f32 %v847, %v865
    %v875 = vadd.f32 %v849, %v865
    %v876 = vadd.f32 %v851, %v865
    %v877 = vadd.f32 %v853, %v865
    %v878 = vadd.f32 %v855, %v865
    %v879 = vadd.f32 %v857, %v865
    %v880 = vadd.f32 %v859, %v865
    %v881 = vadd.f32 %v861, %v865
    %v882 = vxor.u32 %v866, 2147483648
    %v883 = vxor.u32 %v867, 2147483648
    %v884 = vxor.u32 %v868, 2147483648
    %v885 = vxor.u32 %v869, 2147483648
    %v886 = vxor.u32 %v870, 2147483648
    %v887 = vxor.u32 %v871, 2147483648
    %v888 = vxor.u32 %v872, 2147483648
    %v889 = vxor.u32 %v873, 2147483648
    %v890 = vxor.u32 %v874, 2147483648
    %v891 = vxor.u32 %v875, 2147483648
    %v892 = vxor.u32 %v876, 2147483648
    %v893 = vxor.u32 %v877, 2147483648
    %v894 = vxor.u32 %v878, 2147483648
    %v895 = vxor.u32 %v879, 2147483648
    %v896 = vxor.u32 %v880, 2147483648
    %v897 = vxor.u32 %v881, 2147483648
    %v898 = vmul.f32 %v882, 1.442695
    %v899 = vpow.pop %v898
    %v900 = vmul.f32 %v883, 1.442695
    %v901 = vpow.pop %v900
    %v902 = vmul.f32 %v884, 1.442695
    %v903 = vpow.pop %v902
    %v904 = vmul.f32 %v885, 1.442695
    %v905 = vpow.pop %v904
    %v906 = vmul.f32 %v886, 1.442695
    %v907 = vpow.pop %v906
    %v908 = vmul.f32 %v887, 1.442695
    %v909 = vpow.pop %v908
    %v910 = vmul.f32 %v888, 1.442695
    %v911 = vpow.pop %v910
    %v912 = vmul.f32 %v889, 1.442695
    %v913 = vpow.pop %v912
    %v914 = vmul.f32 %v890, 1.442695
    %v915 = vpow.pop %v914
    %v916 = vmul.f32 %v891, 1.442695
    %v917 = vpow.pop %v916
    %v918 = vmul.f32 %v892, 1.442695
    %v919 = vpow.pop %v918
    %v920 = vmul.f32 %v893, 1.442695
    %v921 = vpow.pop %v920
    %v922 = vmul.f32 %v894, 1.442695
    %v923 = vpow.pop %v922
    %v924 = vmul.f32 %v895, 1.442695
    %v925 = vpow.pop %v924
    %v926 = vmul.f32 %v896, 1.442695
    %v927 = vpow.pop %v926
    %v928 = vmul.f32 %v897, 1.442695
    %v929 = vpow.pop %v928
    %v930 = vadd.f32 %v899, 1.0
    %v931 = vadd.f32 %v901, 1.0
    %v932 = vadd.f32 %v903, 1.0
    %v933 = vadd.f32 %v905, 1.0
    %v934 = vadd.f32 %v907, 1.0
    %v935 = vadd.f32 %v909, 1.0
    %v936 = vadd.f32 %v911, 1.0
    %v937 = vadd.f32 %v913, 1.0
    %v938 = vadd.f32 %v915, 1.0
    %v939 = vadd.f32 %v917, 1.0
    %v940 = vadd.f32 %v919, 1.0
    %v941 = vadd.f32 %v921, 1.0
    %v942 = vadd.f32 %v923, 1.0
    %v943 = vadd.f32 %v925, 1.0
    %v944 = vadd.f32 %v927, 1.0
    %v945 = vadd.f32 %v929, 1.0
    %v946 = vrcp.pop %v930
    %v947 = vmul.f32 1.0, %v946
    %v948 = vrcp.pop %v931
    %v949 = vmul.f32 1.0, %v948
    %v950 = vrcp.pop %v932
    %v951 = vmul.f32 1.0, %v950
    %v952 = vrcp.pop %v933
    %v953 = vmul.f32 1.0, %v952
    %v954 = vrcp.pop %v934
    %v955 = vmul.f32 1.0, %v954
    %v956 = vrcp.pop %v935
    %v957 = vmul.f32 1.0, %v956
    %v958 = vrcp.pop %v936
    %v959 = vmul.f32 1.0, %v958
    %v960 = vrcp.pop %v937
    %v961 = vmul.f32 1.0, %v960
    %v962 = vrcp.pop %v938
    %v963 = vmul.f32 1.0, %v962
    %v964 = vrcp.pop %v939
    %v965 = vmul.f32 1.0, %v964
    %v966 = vrcp.pop %v940
    %v967 = vmul.f32 1.0, %v966
    %v968 = vrcp.pop %v941
    %v969 = vmul.f32 1.0, %v968
    %v970 = vrcp.pop %v942
    %v971 = vmul.f32 1.0, %v970
    %v972 = vrcp.pop %v943
    %v973 = vmul.f32 1.0, %v972
    %v974 = vrcp.pop %v944
    %v975 = vmul.f32 1.0, %v974
    %v976 = vrcp.pop %v945
    %v977 = vmul.f32 1.0, %v976
    %v978 = vadd.f32 %v117, %v338
    %v979 = vadd.f32 %v118, %v342
    %v980 = vadd.f32 %v119, %v348
    %v981 = vadd.f32 %v120, %v352
    %v982 = vadd.f32 %v121, %v358
    %v983 = vadd.f32 %v122, %v362
    %v984 = vadd.f32 %v123, %v368
    %v985 = vadd.f32 %v124, %v372
    %v986 = vadd.f32 %v125, %v378
    %v987 = vadd.f32 %v126, %v382
    %v988 = vadd.f32 %v127, %v388
    %v989 = vadd.f32 %v128, %v392
    %v990 = vadd.f32 %v129, %v398
    %v991 = vadd.f32 %v130, %v402
    %v992 = vadd.f32 %v131, %v408
    %v993 = vadd.f32 %v132, %v412
    %995 = vset.pattern.permute.xlu0 0
    %996 = vperm.xlu0 %995, %v947
    %v997 = vpop.permute.xlu0 %996
    %1000 = vset.pattern.permute.xlu0 0
    %1001 = vperm.xlu0 %1000, %v949
    %v1002 = vpop.permute.xlu0 %1001
    %1005 = vset.pattern.permute.xlu0 0
    %1006 = vperm.xlu0 %1005, %v951
    %v1007 = vpop.permute.xlu0 %1006
    %1010 = vset.pattern.permute.xlu0 0
    %1011 = vperm.xlu0 %1010, %v953
    %v1012 = vpop.permute.xlu0 %1011
    %1015 = vset.pattern.permute.xlu0 0
    %1016 = vperm.xlu0 %1015, %v955
    %v1017 = vpop.permute.xlu0 %1016
    %1020 = vset.pattern.permute.xlu0 0
    %1021 = vperm.xlu0 %1020, %v957
    %v1022 = vpop.permute.xlu0 %1021
    %1025 = vset.pattern.permute.xlu0 0
    %1026 = vperm.xlu0 %1025, %v959
    %v1027 = vpop.permute.xlu0 %1026
    %1030 = vset.pattern.permute.xlu0 0
    %1031 = vperm.xlu0 %1030, %v961
    %v1032 = vpop.permute.xlu0 %1031
    %1035 = vset.pattern.permute.xlu0 0
    %1036 = vperm.xlu0 %1035, %v963
    %v1037 = vpop.permute.xlu0 %1036
    %1040 = vset.pattern.permute.xlu0 0
    %1041 = vperm.xlu0 %1040, %v965
    %v1042 = vpop.permute.xlu0 %1041
    %1045 = vset.pattern.permute.xlu0 0
    %1046 = vperm.xlu0 %1045, %v967
    %v1047 = vpop.permute.xlu0 %1046
    %1050 = vset.pattern.permute.xlu0 0
    %1051 = vperm.xlu0 %1050, %v969
    %v1052 = vpop.permute.xlu0 %1051
    %1055 = vset.pattern.permute.xlu0 0
    %1056 = vperm.xlu0 %1055, %v971
    %v1057 = vpop.permute.xlu0 %1056
    %1060 = vset.pattern.permute.xlu0 0
    %1061 = vperm.xlu0 %1060, %v973
    %v1062 = vpop.permute.xlu0 %1061
    %1065 = vset.pattern.permute.xlu0 0
    %1066 = vperm.xlu0 %1065, %v975
    %v1067 = vpop.permute.xlu0 %1066
    %1070 = vset.pattern.permute.xlu0 0
    %1071 = vperm.xlu0 %1070, %v977
    %v1072 = vpop.permute.xlu0 %1071
    %v1074 = vmul.f32 %v997, %v978
    %v1075 = vmul.f32 %v1002, %v979
    %v1076 = vmul.f32 %v1007, %v980
    %v1077 = vmul.f32 %v1012, %v981
    %v1078 = vmul.f32 %v1017, %v982
    %v1079 = vmul.f32 %v1022, %v983
    %v1080 = vmul.f32 %v1027, %v984
    %v1081 = vmul.f32 %v1032, %v985
    %v1082 = vmul.f32 %v1037, %v986
    %v1083 = vmul.f32 %v1042, %v987
    %v1084 = vmul.f32 %v1047, %v988
    %v1085 = vmul.f32 %v1052, %v989
    %v1086 = vmul.f32 %v1057, %v990
    %v1087 = vmul.f32 %v1062, %v991
    %v1088 = vmul.f32 %v1067, %v992
    %v1089 = vmul.f32 %v1072, %v993
    %v1090 = vpack.c.bf16 %v1075, %v1074
    %v1091 = vpack.c.bf16 %v1077, %v1076
    %v1092 = vpack.c.bf16 %v1079, %v1078
    %v1093 = vpack.c.bf16 %v1081, %v1080
    %v1094 = vpack.c.bf16 %v1083, %v1082
    %v1095 = vpack.c.bf16 %v1085, %v1084
    %v1096 = vpack.c.bf16 %v1087, %v1086
    %v1097 = vpack.c.bf16 %v1089, %v1088
    %v1098 = vlaneseq
    %v1099 = vshrl.u32 %v1098, 7
    %s1100 = smul.u32 0, 8
    %v1101 = vstv %s1100
    %v1102 = vadd.s32 %v1099, %v1101
    %v1103 = vlaneseq
    %v1104 = vshrl.u32 %v1103, 7
    %v1105 = vsub.s32 0, %v1104
    %v1106 = vrot.slane %v165, %v1105
    %vm1107 = vcmp.eq.s32.totalorder %v1102, %v1106
    %v1108 = vsel %vm1107, 1, 0
    %v1109 = vcvt.s32.f32 %v1108
    %v1110 = vpack.c.bf16 %v1109, %v1109
    %v1111 = vld [vmem:[#allocation2] sm:$0xff]
    %1112 = vmatprep.subr.bf16.mxu0 0
    %1113 = vmatpush1.bf16.msra.mxu0 %v1090
    %1114 = vmatprep.subr.bf16.mxu0 0
    %1115 = vmatpush1.bf16.msra.mxu0 %v1091
    %1116 = vmatprep.subr.bf16.mxu0 0
    %1117 = vmatpush1.bf16.msra.mxu0 %v1092
    %1118 = vmatprep.subr.bf16.mxu0 0
    %1119 = vmatpush1.bf16.msra.mxu0 %v1093
    %1120 = vmatprep.subr.bf16.mxu0 0
    %1121 = vmatpush1.bf16.msra.mxu0 %v1094
    %1122 = vmatprep.subr.bf16.mxu0 0
    %1123 = vmatpush1.bf16.msra.mxu0 %v1095
    %1124 = vmatprep.subr.bf16.mxu0 0
    %1125 = vmatpush1.bf16.msra.mxu0 %v1096
    %1126 = vmatprep.subr.bf16.mxu0 0
    %1127 = vmatpush1.bf16.msra.mxu0 %v1097
    %1128 = vmatprep.subr.bf16.mxu0 0
    %1129 = vmatpush1.bf16.msra.mxu0 0
    %1130 = vmatprep.subr.bf16.mxu0 0
    %1131 = vmatpush1.bf16.msra.mxu0 0
    %1132 = vmatprep.subr.bf16.mxu0 0
    %1133 = vmatpush1.bf16.msra.mxu0 0
    %1134 = vmatprep.subr.bf16.mxu0 0
    %1135 = vmatpush1.bf16.msra.mxu0 0
    %1136 = vmatprep.subr.bf16.mxu0 0
    %1137 = vmatpush1.bf16.msra.mxu0 0
    %1138 = vmatprep.subr.bf16.mxu0 0
    %1139 = vmatpush1.bf16.msra.mxu0 0
    %1140 = vmatprep.subr.bf16.mxu0 0
    %1141 = vmatpush1.bf16.msra.mxu0 0
    %1142 = vmatprep.subr.bf16.mxu0 0
    %1143 = vmatpush1.bf16.msra.mxu0 0
    %1144 = vmatprep.mubr.bf16.mxu0 0
    %1145 = vmatmul.mubr.bf16.gmra.mrb[0].mxu0 %v1110
    %v1146 = vpop.f32.mrb[0].mxu0
    %v1147 = vadd.f32 0.0, %v1146
    %v1148 = vpop.f32.mrb[0].mxu0
    %v1149 = vpop.f32.mrb[0].mxu0
    %v1150 = vpop.f32.mrb[0].mxu0
    %1151 = vdwg.mxu0
    %v1152 = vadd.f32 %v1111, %v1147
    %1153 = vst [vmem:[#allocation2] sm:$0xff] %v1152
    // Predicated region
    $region78: #{tpu_custom_call.1} parent=1 // pred_check
      %p1154 = pneg %p112
    $region79: #{tpu_custom_call.1} parent=1 // pred_check_branch
      %1156 = sbr.rel (%p1154) target = $region81
    $region80: #{tpu_custom_call.1} parent=1 // pred_region
      %v1157 = vld [vmem:[#allocation2] sm:$0xff]
      %v1158 = vpack.c.bf16 %v1157, %v1157
      %v1159 = vld [vmem:[#allocation8] sm:$0xff]
      %v1160 = vld [vmem:[#allocation8 + $0x8] sm:$0xff]
      %v1161 = vld [vmem:[#allocation8 + $0x10] sm:$0xff]
      %v1162 = vld [vmem:[#allocation8 + $0x18] sm:$0xff]
      %v1163 = vld [vmem:[#allocation8 + $0x20] sm:$0xff]
      %v1164 = vld [vmem:[#allocation8 + $0x28] sm:$0xff]
      %v1165 = vld [vmem:[#allocation8 + $0x30] sm:$0xff]
      %v1166 = vld [vmem:[#allocation8 + $0x38] sm:$0xff]
      %v1167 = vld [vmem:[#allocation8 + $0x40] sm:$0xff]
      %v1168 = vld [vmem:[#allocation8 + $0x48] sm:$0xff]
      %v1169 = vld [vmem:[#allocation8 + $0x50] sm:$0xff]
      %v1170 = vld [vmem:[#allocation8 + $0x58] sm:$0xff]
      %v1171 = vld [vmem:[#allocation8 + $0x60] sm:$0xff]
      %v1172 = vld [vmem:[#allocation8 + $0x68] sm:$0xff]
      %v1173 = vld [vmem:[#allocation8 + $0x70] sm:$0xff]
      %v1174 = vld [vmem:[#allocation8 + $0x78] sm:$0xff]
      %v1175 = vpack.c.bf16 %v1160, %v1159
      %v1176 = vpack.c.bf16 %v1162, %v1161
      %v1177 = vpack.c.bf16 %v1164, %v1163
      %v1178 = vpack.c.bf16 %v1166, %v1165
      %v1179 = vpack.c.bf16 %v1168, %v1167
      %v1180 = vpack.c.bf16 %v1170, %v1169
      %v1181 = vpack.c.bf16 %v1172, %v1171
      %v1182 = vpack.c.bf16 %v1174, %v1173
      %1183 = vmatprep.subr.bf16.mxu0 0
      %1184 = vmatpush1.bf16.msra.mxu0 %v1175
      %1185 = vmatprep.subr.bf16.mxu0 0
      %1186 = vmatpush1.bf16.msra.mxu0 %v1176
      %1187 = vmatprep.subr.bf16.mxu0 0
      %1188 = vmatpush1.bf16.msra.mxu0 %v1177
      %1189 = vmatprep.subr.bf16.mxu0 0
      %1190 = vmatpush1.bf16.msra.mxu0 %v1178
      %1191 = vmatprep.subr.bf16.mxu0 0
      %1192 = vmatpush1.bf16.msra.mxu0 %v1179
      %1193 = vmatprep.subr.bf16.mxu0 0
      %1194 = vmatpush1.bf16.msra.mxu0 %v1180
      %1195 = vmatprep.subr.bf16.mxu0 0
      %1196 = vmatpush1.bf16.msra.mxu0 %v1181
      %1197 = vmatprep.subr.bf16.mxu0 0
      %1198 = vmatpush1.bf16.msra.mxu0 %v1182
      %1199 = vmatprep.subr.bf16.mxu0 0
      %1200 = vmatpush1.bf16.msra.mxu0 0
      %1201 = vmatprep.subr.bf16.mxu0 0
      %1202 = vmatpush1.bf16.msra.mxu0 0
      %1203 = vmatprep.subr.bf16.mxu0 0
      %1204 = vmatpush1.bf16.msra.mxu0 0
      %1205 = vmatprep.subr.bf16.mxu0 0
      %1206 = vmatpush1.bf16.msra.mxu0 0
      %1207 = vmatprep.subr.bf16.mxu0 0
      %1208 = vmatpush1.bf16.msra.mxu0 0
      %1209 = vmatprep.subr.bf16.mxu0 0
      %1210 = vmatpush1.bf16.msra.mxu0 0
      %1211 = vmatprep.subr.bf16.mxu0 0
      %1212 = vmatpush1.bf16.msra.mxu0 0
      %1213 = vmatprep.subr.bf16.mxu0 0
      %1214 = vmatpush1.bf16.msra.mxu0 0
      %1215 = vmatprep.mubr.bf16.mxu0 0
      %1216 = vmatmul.mubr.bf16.gmra.mrb[0].mxu0 %v1158
      %v1217 = vpop.f32.mrb[0].mxu0
      %v1218 = vadd.f32 0.0, %v1217
      %v1219 = vpop.f32.mrb[0].mxu0
      %v1220 = vpop.f32.mrb[0].mxu0
      %v1221 = vpop.f32.mrb[0].mxu0
      %1222 = vdwg.mxu0
      %v1223 = vmax.f32 %v1218, 0.0
      %v1224 = vld [vmem:[%s4] sm:$0xff]
      %v1225 = vld [vmem:[%s12] sm:$0x3f]
      %v1226 = vpack.c.bf16 %v1223, %v1223
      %v1227 = vld [vmem:[#allocation9] sm:$0xff]
      %v1228 = vld [vmem:[#allocation9 + $0x8] sm:$0xff]
      %v1229 = vld [vmem:[#allocation9 + $0x10] sm:$0xff]
      %v1230 = vld [vmem:[#allocation9 + $0x18] sm:$0xff]
      %v1231 = vld [vmem:[#allocation9 + $0x20] sm:$0xff]
      %v1232 = vld [vmem:[#allocation9 + $0x28] sm:$0xff]
      %v1233 = vld [vmem:[#allocation9 + $0x30] sm:$0xff]
      %v1234 = vld [vmem:[#allocation9 + $0x38] sm:$0xff]
      %v1235 = vld [vmem:[#allocation9 + $0x40] sm:$0xff]
      %v1236 = vld [vmem:[#allocation9 + $0x48] sm:$0xff]
      %v1237 = vld [vmem:[#allocation9 + $0x50] sm:$0xff]
      %v1238 = vld [vmem:[#allocation9 + $0x58] sm:$0xff]
      %v1239 = vld [vmem:[#allocation9 + $0x60] sm:$0xff]
      %v1240 = vld [vmem:[#allocation9 + $0x68] sm:$0xff]
      %v1241 = vld [vmem:[#allocation9 + $0x70] sm:$0xff]
      %v1242 = vld [vmem:[#allocation9 + $0x78] sm:$0xff]
      %v1243 = vld [vmem:[#allocation9 + $0x80] sm:$0xff]
      %v1244 = vld [vmem:[#allocation9 + $0x88] sm:$0xff]
      %v1245 = vld [vmem:[#allocation9 + $0x90] sm:$0xff]
      %v1246 = vld [vmem:[#allocation9 + $0x98] sm:$0xff]
      %v1247 = vld [vmem:[#allocation9 + $0xa0] sm:$0xff]
      %v1248 = vld [vmem:[#allocation9 + $0xa8] sm:$0xff]
      %v1249 = vld [vmem:[#allocation9 + $0xb0] sm:$0xff]
      %v1250 = vld [vmem:[#allocation9 + $0xb8] sm:$0xff]
      %v1251 = vld [vmem:[#allocation9 + $0xc0] sm:$0xff]
      %v1252 = vld [vmem:[#allocation9 + $0xc8] sm:$0xff]
      %v1253 = vld [vmem:[#allocation9 + $0xd0] sm:$0xff]
      %v1254 = vld [vmem:[#allocation9 + $0xd8] sm:$0xff]
      %v1255 = vld [vmem:[#allocation9 + $0xe0] sm:$0xff]
      %v1256 = vld [vmem:[#allocation9 + $0xe8] sm:$0xff]
      %v1257 = vld [vmem:[#allocation9 + $0xf0] sm:$0xff]
      %v1258 = vld [vmem:[#allocation9 + $0xf8] sm:$0xff]
      %v1259 = vld [vmem:[#allocation9 + $0x100] sm:$0xff]
      %v1260 = vld [vmem:[#allocation9 + $0x108] sm:$0xff]
      %v1261 = vld [vmem:[#allocation9 + $0x110] sm:$0xff]
      %v1262 = vld [vmem:[#allocation9 + $0x118] sm:$0xff]
      %v1263 = vld [vmem:[#allocation9 + $0x120] sm:$0xff]
      %v1264 = vld [vmem:[#allocation9 + $0x128] sm:$0xff]
      %v1265 = vld [vmem:[#allocation9 + $0x130] sm:$0xff]
      %v1266 = vld [vmem:[#allocation9 + $0x138] sm:$0xff]
      %v1267 = vld [vmem:[#allocation9 + $0x140] sm:$0xff]
      %v1268 = vld [vmem:[#allocation9 + $0x148] sm:$0xff]
      %v1269 = vld [vmem:[#allocation9 + $0x150] sm:$0xff]
      %v1270 = vld [vmem:[#allocation9 + $0x158] sm:$0xff]
      %v1271 = vld [vmem:[#allocation9 + $0x160] sm:$0xff]
      %v1272 = vld [vmem:[#allocation9 + $0x168] sm:$0xff]
      %v1273 = vld [vmem:[#allocation9 + $0x170] sm:$0xff]
      %v1274 = vld [vmem:[#allocation9 + $0x178] sm:$0xff]
      %v1275 = vpack.c.bf16 %v1230, %v1227
      %v1276 = vpack.c.bf16 %v1231, %v1228
      %v1277 = vpack.c.bf16 %v1232, %v1229
      %v1278 = vpack.c.bf16 %v1236, %v1233
      %v1279 = vpack.c.bf16 %v1237, %v1234
      %v1280 = vpack.c.bf16 %v1238, %v1235
      %v1281 = vpack.c.bf16 %v1242, %v1239
      %v1282 = vpack.c.bf16 %v1243, %v1240
      %v1283 = vpack.c.bf16 %v1244, %v1241
      %v1284 = vpack.c.bf16 %v1248, %v1245
      %v1285 = vpack.c.bf16 %v1249, %v1246
      %v1286 = vpack.c.bf16 %v1250, %v1247
      %v1287 = vpack.c.bf16 %v1254, %v1251
      %v1288 = vpack.c.bf16 %v1255, %v1252
      %v1289 = vpack.c.bf16 %v1256, %v1253
      %v1290 = vpack.c.bf16 %v1260, %v1257
      %v1291 = vpack.c.bf16 %v1261, %v1258
      %v1292 = vpack.c.bf16 %v1262, %v1259
      %v1293 = vpack.c.bf16 %v1266, %v1263
      %v1294 = vpack.c.bf16 %v1267, %v1264
      %v1295 = vpack.c.bf16 %v1268, %v1265
      %v1296 = vpack.c.bf16 %v1272, %v1269
      %v1297 = vpack.c.bf16 %v1273, %v1270
      %v1298 = vpack.c.bf16 %v1274, %v1271
      %v1300 = vlaneseq
      %v1301 = vshrl.u32 %v1300, 7
      %v1302 = vsub.s32 0, %v1301
      %v1303 = vrot.slane %v1225, %v1302
      %v1304 = vlaneseq
      %v1305 = vshrl.u32 %v1304, 7
      %v1306 = vsub.s32 2, %v1305
      %v1307 = vrot.slane %v1225, %v1306
      %v1308 = vlaneseq
      %v1309 = vshrl.u32 %v1308, 7
      %v1310 = vsub.s32 4, %v1309
      %v1311 = vrot.slane %v1225, %v1310
      %v1315 = vlaneseq
      %v1316 = vshrl.u32 %v1315, 7
      %v1317 = vsub.s32 0, %v1316
      %v1318 = vrot.slane %v1303, %v1317
      %v1319 = vlaneseq
      %v1320 = vshrl.u32 %v1319, 7
      %v1321 = vsub.s32 0, %v1320
      %v1322 = vrot.slane %v1307, %v1321
      %v1323 = vlaneseq
      %v1324 = vshrl.u32 %v1323, 7
      %v1325 = vsub.s32 0, %v1324
      %v1326 = vrot.slane %v1311, %v1325
      %1327 = vmatprep.subr.bf16.mxu0 %v1276
      %1328 = vmatpush1.bf16.msra.mxu0 %v1275
      %1329 = vmatprep.subr.bf16.mxu0 %v1279
      %1330 = vmatpush1.bf16.msra.mxu0 %v1278
      %1331 = vmatprep.subr.bf16.mxu0 %v1282
      %1332 = vmatpush1.bf16.msra.mxu0 %v1281
      %1333 = vmatprep.subr.bf16.mxu0 %v1285
      %1334 = vmatpush1.bf16.msra.mxu0 %v1284
      %1335 = vmatprep.subr.bf16.mxu0 %v1288
      %1336 = vmatpush1.bf16.msra.mxu0 %v1287
      %1337 = vmatprep.subr.bf16.mxu0 %v1291
      %1338 = vmatpush1.bf16.msra.mxu0 %v1290
      %1339 = vmatprep.subr.bf16.mxu0 %v1294
      %1340 = vmatpush1.bf16.msra.mxu0 %v1293
      %1341 = vmatprep.subr.bf16.mxu0 %v1297
      %1342 = vmatpush1.bf16.msra.mxu0 %v1296
      %1343 = vmatprep.subr.bf16.mxu0 0
      %1344 = vmatpush1.bf16.msra.mxu0 0
      %1345 = vmatprep.subr.bf16.mxu0 0
      %1346 = vmatpush1.bf16.msra.mxu0 0
      %1347 = vmatprep.subr.bf16.mxu0 0
      %1348 = vmatpush1.bf16.msra.mxu0 0
      %1349 = vmatprep.subr.bf16.mxu0 0
      %1350 = vmatpush1.bf16.msra.mxu0 0
      %1351 = vmatprep.subr.bf16.mxu0 0
      %1352 = vmatpush1.bf16.msra.mxu0 0
      %1353 = vmatprep.subr.bf16.mxu0 0
      %1354 = vmatpush1.bf16.msra.mxu0 0
      %1355 = vmatprep.subr.bf16.mxu0 0
      %1356 = vmatpush1.bf16.msra.mxu0 0
      %1357 = vmatprep.subr.bf16.mxu0 0
      %1358 = vmatpush1.bf16.msra.mxu0 0
      %1359 = vmatprep.mubr.bf16.mxu0 0
      %1360 = vmatmul.mubr.bf16.gmra.mrb[0].mxu0 %v1226
      %v1361 = vpop.f32.mrb[0].mxu0
      %v1362 = vadd.f32 %v1318, %v1361
      %v1363 = vpop.f32.mrb[0].mxu0
      %v1364 = vadd.f32 %v1322, %v1363
      %v1365 = vpop.f32.mrb[0].mxu0
      %v1366 = vpop.f32.mrb[0].mxu0
      %1367 = vdwg.mxu0
      %1368 = vmatprep.subr.bf16.mxu0 0
      %1369 = vmatpush1.bf16.msra.mxu0 %v1277
      %1370 = vmatprep.subr.bf16.mxu0 0
      %1371 = vmatpush1.bf16.msra.mxu0 %v1280
      %1372 = vmatprep.subr.bf16.mxu0 0
      %1373 = vmatpush1.bf16.msra.mxu0 %v1283
      %1374 = vmatprep.subr.bf16.mxu0 0
      %1375 = vmatpush1.bf16.msra.mxu0 %v1286
      %1376 = vmatprep.subr.bf16.mxu0 0
      %1377 = vmatpush1.bf16.msra.mxu0 %v1289
      %1378 = vmatprep.subr.bf16.mxu0 0
      %1379 = vmatpush1.bf16.msra.mxu0 %v1292
      %1380 = vmatprep.subr.bf16.mxu0 0
      %1381 = vmatpush1.bf16.msra.mxu0 %v1295
      %1382 = vmatprep.subr.bf16.mxu0 0
      %1383 = vmatpush1.bf16.msra.mxu0 %v1298
      %1384 = vmatprep.subr.bf16.mxu0 0
      %1385 = vmatpush1.bf16.msra.mxu0 0
      %1386 = vmatprep.subr.bf16.mxu0 0
      %1387 = vmatpush1.bf16.msra.mxu0 0
      %1388 = vmatprep.subr.bf16.mxu0 0
      %1389 = vmatpush1.bf16.msra.mxu0 0
      %1390 = vmatprep.subr.bf16.mxu0 0
      %1391 = vmatpush1.bf16.msra.mxu0 0
      %1392 = vmatprep.subr.bf16.mxu0 0
      %1393 = vmatpush1.bf16.msra.mxu0 0
      %1394 = vmatprep.subr.bf16.mxu0 0
      %1395 = vmatpush1.bf16.msra.mxu0 0
      %1396 = vmatprep.subr.bf16.mxu0 0
      %1397 = vmatpush1.bf16.msra.mxu0 0
      %1398 = vmatprep.subr.bf16.mxu0 0
      %1399 = vmatpush1.bf16.msra.mxu0 0
      %1400 = vmatprep.mubr.bf16.mxu0 0
      %1401 = vmatmul.mubr.bf16.gmra.mrb[0].mxu0 %v1226
      %v1402 = vpop.f32.mrb[0].mxu0
      %v1403 = vadd.f32 %v1326, %v1402
      %v1404 = vpop.f32.mrb[0].mxu0
      %v1405 = vpop.f32.mrb[0].mxu0
      %v1406 = vpop.f32.mrb[0].mxu0
      %1407 = vdwg.mxu0
      %v1408 = vpack.c.bf16 %v1224, %v1224
      %v1409 = vld [vmem:[#allocation11] sm:$0xff]
      %v1410 = vld [vmem:[#allocation11 + $0x8] sm:$0xff]
      %v1411 = vld [vmem:[#allocation11 + $0x10] sm:$0xff]
      %v1412 = vld [vmem:[#allocation11 + $0x18] sm:$0xff]
      %v1413 = vld [vmem:[#allocation11 + $0x20] sm:$0xff]
      %v1414 = vld [vmem:[#allocation11 + $0x28] sm:$0xff]
      %v1415 = vld [vmem:[#allocation11 + $0x30] sm:$0xff]
      %v1416 = vld [vmem:[#allocation11 + $0x38] sm:$0xff]
      %v1417 = vld [vmem:[#allocation11 + $0x40] sm:$0xff]
      %v1418 = vld [vmem:[#allocation11 + $0x48] sm:$0xff]
      %v1419 = vld [vmem:[#allocation11 + $0x50] sm:$0xff]
      %v1420 = vld [vmem:[#allocation11 + $0x58] sm:$0xff]
      %v1421 = vld [vmem:[#allocation11 + $0x60] sm:$0xff]
      %v1422 = vld [vmem:[#allocation11 + $0x68] sm:$0xff]
      %v1423 = vld [vmem:[#allocation11 + $0x70] sm:$0xff]
      %v1424 = vld [vmem:[#allocation11 + $0x78] sm:$0xff]
      %v1425 = vld [vmem:[#allocation11 + $0x80] sm:$0xff]
      %v1426 = vld [vmem:[#allocation11 + $0x88] sm:$0xff]
      %v1427 = vld [vmem:[#allocation11 + $0x90] sm:$0xff]
      %v1428 = vld [vmem:[#allocation11 + $0x98] sm:$0xff]
      %v1429 = vld [vmem:[#allocation11 + $0xa0] sm:$0xff]
      %v1430 = vld [vmem:[#allocation11 + $0xa8] sm:$0xff]
      %v1431 = vld [vmem:[#allocation11 + $0xb0] sm:$0xff]
      %v1432 = vld [vmem:[#allocation11 + $0xb8] sm:$0xff]
      %v1433 = vld [vmem:[#allocation11 + $0xc0] sm:$0xff]
      %v1434 = vld [vmem:[#allocation11 + $0xc8] sm:$0xff]
      %v1435 = vld [vmem:[#allocation11 + $0xd0] sm:$0xff]
      %v1436 = vld [vmem:[#allocation11 + $0xd8] sm:$0xff]
      %v1437 = vld [vmem:[#allocation11 + $0xe0] sm:$0xff]
      %v1438 = vld [vmem:[#allocation11 + $0xe8] sm:$0xff]
      %v1439 = vld [vmem:[#allocation11 + $0xf0] sm:$0xff]
      %v1440 = vld [vmem:[#allocation11 + $0xf8] sm:$0xff]
      %v1441 = vld [vmem:[#allocation11 + $0x100] sm:$0xff]
      %v1442 = vld [vmem:[#allocation11 + $0x108] sm:$0xff]
      %v1443 = vld [vmem:[#allocation11 + $0x110] sm:$0xff]
      %v1444 = vld [vmem:[#allocation11 + $0x118] sm:$0xff]
      %v1445 = vld [vmem:[#allocation11 + $0x120] sm:$0xff]
      %v1446 = vld [vmem:[#allocation11 + $0x128] sm:$0xff]
      %v1447 = vld [vmem:[#allocation11 + $0x130] sm:$0xff]
      %v1448 = vld [vmem:[#allocation11 + $0x138] sm:$0xff]
      %v1449 = vld [vmem:[#allocation11 + $0x140] sm:$0xff]
      %v1450 = vld [vmem:[#allocation11 + $0x148] sm:$0xff]
      %v1451 = vld [vmem:[#allocation11 + $0x150] sm:$0xff]
      %v1452 = vld [vmem:[#allocation11 + $0x158] sm:$0xff]
      %v1453 = vld [vmem:[#allocation11 + $0x160] sm:$0xff]
      %v1454 = vld [vmem:[#allocation11 + $0x168] sm:$0xff]
      %v1455 = vld [vmem:[#allocation11 + $0x170] sm:$0xff]
      %v1456 = vld [vmem:[#allocation11 + $0x178] sm:$0xff]
      %v1457 = vpack.c.bf16 %v1412, %v1409
      %v1458 = vpack.c.bf16 %v1413, %v1410
      %v1459 = vpack.c.bf16 %v1414, %v1411
      %v1460 = vpack.c.bf16 %v1418, %v1415
      %v1461 = vpack.c.bf16 %v1419, %v1416
      %v1462 = vpack.c.bf16 %v1420, %v1417
      %v1463 = vpack.c.bf16 %v1424, %v1421
      %v1464 = vpack.c.bf16 %v1425, %v1422
      %v1465 = vpack.c.bf16 %v1426, %v1423
      %v1466 = vpack.c.bf16 %v1430, %v1427
      %v1467 = vpack.c.bf16 %v1431, %v1428
      %v1468 = vpack.c.bf16 %v1432, %v1429
      %v1469 = vpack.c.bf16 %v1436, %v1433
      %v1470 = vpack.c.bf16 %v1437, %v1434
      %v1471 = vpack.c.bf16 %v1438, %v1435
      %v1472 = vpack.c.bf16 %v1442, %v1439
      %v1473 = vpack.c.bf16 %v1443, %v1440
      %v1474 = vpack.c.bf16 %v1444, %v1441
      %v1475 = vpack.c.bf16 %v1448, %v1445
      %v1476 = vpack.c.bf16 %v1449, %v1446
      %v1477 = vpack.c.bf16 %v1450, %v1447
      %v1478 = vpack.c.bf16 %v1454, %v1451
      %v1479 = vpack.c.bf16 %v1455, %v1452
      %v1480 = vpack.c.bf16 %v1456, %v1453
      %v1481 = vlaneseq
      %v1482 = vshrl.u32 %v1481, 7
      %v1483 = vsub.s32 1, %v1482
      %v1484 = vrot.slane %v1225, %v1483
      %v1485 = vlaneseq
      %v1486 = vshrl.u32 %v1485, 7
      %v1487 = vsub.s32 3, %v1486
      %v1488 = vrot.slane %v1225, %v1487
      %v1489 = vlaneseq
      %v1490 = vshrl.u32 %v1489, 7
      %v1491 = vsub.s32 5, %v1490
      %v1492 = vrot.slane %v1225, %v1491
      %v1496 = vlaneseq
      %v1497 = vshrl.u32 %v1496, 7
      %v1498 = vsub.s32 1, %v1497
      %v1499 = vrot.slane %v1484, %v1498
      %v1500 = vlaneseq
      %v1501 = vshrl.u32 %v1500, 7
      %v1502 = vsub.s32 1, %v1501
      %v1503 = vrot.slane %v1488, %v1502
      %v1504 = vlaneseq
      %v1505 = vshrl.u32 %v1504, 7
      %v1506 = vsub.s32 1, %v1505
      %v1507 = vrot.slane %v1492, %v1506
      %1508 = vmatprep.subr.bf16.mxu0 %v1458
      %1509 = vmatpush1.bf16.msra.mxu0 %v1457
      %1510 = vmatprep.subr.bf16.mxu0 %v1461
      %1511 = vmatpush1.bf16.msra.mxu0 %v1460
      %1512 = vmatprep.subr.bf16.mxu0 %v1464
      %1513 = vmatpush1.bf16.msra.mxu0 %v1463
      %1514 = vmatprep.subr.bf16.mxu0 %v1467
      %1515 = vmatpush1.bf16.msra.mxu0 %v1466
      %1516 = vmatprep.subr.bf16.mxu0 %v1470
      %1517 = vmatpush1.bf16.msra.mxu0 %v1469
      %1518 = vmatprep.subr.bf16.mxu0 %v1473
      %1519 = vmatpush1.bf16.msra.mxu0 %v1472
      %1520 = vmatprep.subr.bf16.mxu0 %v1476
      %1521 = vmatpush1.bf16.msra.mxu0 %v1475
      %1522 = vmatprep.subr.bf16.mxu0 %v1479
      %1523 = vmatpush1.bf16.msra.mxu0 %v1478
      %1524 = vmatprep.subr.bf16.mxu0 0
      %1525 = vmatpush1.bf16.msra.mxu0 0
      %1526 = vmatprep.subr.bf16.mxu0 0
      %1527 = vmatpush1.bf16.msra.mxu0 0
      %1528 = vmatprep.subr.bf16.mxu0 0
      %1529 = vmatpush1.bf16.msra.mxu0 0
      %1530 = vmatprep.subr.bf16.mxu0 0
      %1531 = vmatpush1.bf16.msra.mxu0 0
      %1532 = vmatprep.subr.bf16.mxu0 0
      %1533 = vmatpush1.bf16.msra.mxu0 0
      %1534 = vmatprep.subr.bf16.mxu0 0
      %1535 = vmatpush1.bf16.msra.mxu0 0
      %1536 = vmatprep.subr.bf16.mxu0 0
      %1537 = vmatpush1.bf16.msra.mxu0 0
      %1538 = vmatprep.subr.bf16.mxu0 0
      %1539 = vmatpush1.bf16.msra.mxu0 0
      %1540 = vmatprep.mubr.bf16.mxu0 0
      %1541 = vmatmul.mubr.bf16.gmra.mrb[0].mxu0 %v1408
      %v1542 = vpop.f32.mrb[0].mxu0
      %v1543 = vadd.f32 %v1499, %v1542
      %v1544 = vpop.f32.mrb[0].mxu0
      %v1545 = vadd.f32 %v1503, %v1544
      %v1546 = vpop.f32.mrb[0].mxu0
      %v1547 = vpop.f32.mrb[0].mxu0
      %1548 = vdwg.mxu0
      %1549 = vmatprep.subr.bf16.mxu0 0
      %1550 = vmatpush1.bf16.msra.mxu0 %v1459
      %1551 = vmatprep.subr.bf16.mxu0 0
      %1552 = vmatpush1.bf16.msra.mxu0 %v1462
      %1553 = vmatprep.subr.bf16.mxu0 0
      %1554 = vmatpush1.bf16.msra.mxu0 %v1465
      %1555 = vmatprep.subr.bf16.mxu0 0
      %1556 = vmatpush1.bf16.msra.mxu0 %v1468
      %1557 = vmatprep.subr.bf16.mxu0 0
      %1558 = vmatpush1.bf16.msra.mxu0 %v1471
      %1559 = vmatprep.subr.bf16.mxu0 0
      %1560 = vmatpush1.bf16.msra.mxu0 %v1474
      %1561 = vmatprep.subr.bf16.mxu0 0
      %1562 = vmatpush1.bf16.msra.mxu0 %v1477
      %1563 = vmatprep.subr.bf16.mxu0 0
      %1564 = vmatpush1.bf16.msra.mxu0 %v1480
      %1565 = vmatprep.subr.bf16.mxu0 0
      %1566 = vmatpush1.bf16.msra.mxu0 0
      %1567 = vmatprep.subr.bf16.mxu0 0
      %1568 = vmatpush1.bf16.msra.mxu0 0
      %1569 = vmatprep.subr.bf16.mxu0 0
      %1570 = vmatpush1.bf16.msra.mxu0 0
      %1571 = vmatprep.subr.bf16.mxu0 0
      %1572 = vmatpush1.bf16.msra.mxu0 0
      %1573 = vmatprep.subr.bf16.mxu0 0
      %1574 = vmatpush1.bf16.msra.mxu0 0
      %1575 = vmatprep.subr.bf16.mxu0 0
      %1576 = vmatpush1.bf16.msra.mxu0 0
      %1577 = vmatprep.subr.bf16.mxu0 0
      %1578 = vmatpush1.bf16.msra.mxu0 0
      %1579 = vmatprep.subr.bf16.mxu0 0
      %1580 = vmatpush1.bf16.msra.mxu0 0
      %1581 = vmatprep.mubr.bf16.mxu0 0
      %1582 = vmatmul.mubr.bf16.gmra.mrb[0].mxu0 %v1408
      %v1583 = vpop.f32.mrb[0].mxu0
      %v1584 = vadd.f32 %v1507, %v1583
      %v1585 = vpop.f32.mrb[0].mxu0
      %v1586 = vpop.f32.mrb[0].mxu0
      %v1587 = vpop.f32.mrb[0].mxu0
      %1588 = vdwg.mxu0
      %v1589 = vadd.f32 %v1362, %v1543
      %v1590 = vxor.u32 %v1589, 2147483648
      %v1591 = vmul.f32 %v1590, 1.442695
      %v1592 = vpow.pop %v1591
      %v1593 = vadd.f32 %v1592, 1.0
      %v1594 = vrcp.pop %v1593
      %v1595 = vmul.f32 1.0, %v1594
      %v1596 = vadd.f32 %v1364, %v1545
      %v1597 = vxor.u32 %v1596, 2147483648
      %v1598 = vmul.f32 %v1597, 1.442695
      %v1599 = vpow.pop %v1598
      %v1600 = vadd.f32 %v1599, 1.0
      %v1601 = vrcp.pop %v1600
      %v1602 = vmul.f32 1.0, %v1601
      %v1603 = vmul.f32 %v1595, %v1584
      %v1604 = vadd.f32 %v1403, %v1603
      %v1605 = vtanh.pop %v1604
      %v1606 = vsub.f32 1.0, %v1602
      %v1607 = vmul.f32 %v1606, %v1605
      %v1608 = vmul.f32 %v1602, %v1224
      %v1609 = vadd.f32 %v1607, %v1608
      %1610 = vst [vmem:[#allocation12] sm:$0xff] %v1609
    $region81: #{tpu_custom_call.1} parent=1 // pred_fallthru
      _
    // Predicated region
    $region82: #{tpu_custom_call.1} parent=1 // pred_check
      _
    $region83: #{tpu_custom_call.1} parent=1 // pred_check_branch
      %1612 = sbr.rel (0) target = $region85
    $region84: #{tpu_custom_call.1} parent=1 // pred_region
      %s1614 = ssub.s32 128, 128
      %1615 = vsyncadd [#allocation5], %s1614
      %s1617 = sshll.u32 [#allocation12], 4
      %s1618 = int_to_ptr.vmem [resolvable:$true] %s1617
      %1620 = dma.vmem_to_hbm [thread:$0]  %s1618, 128, %s13, [#allocation5]
    $region85: #{tpu_custom_call.1} parent=1 // pred_fallthru
      _
    // Predicated region
    $region86: #{tpu_custom_call.1} parent=1 // pred_check
      _
    $region87: #{tpu_custom_call.1} parent=1 // pred_check_branch
      %1622 = sbr.rel (0) target = $region89
    $region88: #{tpu_custom_call.1} parent=1 // pred_region
      %1623 = dma.done [#allocation5], 128
    $region89: #{tpu_custom_call.1} parent=1 // pred_fallthru
      _
    %1624 = vsyncpa [#allocation4], 1
    %1625 = vsyncpa [#allocation7], 1
    %1626 = vsyncpa [#allocation10], 1
    %1627 = vsyncpa [#allocation5], 1

</llo_original>
